<compile_context>
chip_gen: v5e
topology: v5e:2x2
jax: 0.10.0
libtpu: 0.0.40
codegen_flags: <defaults>
</compile_context>

<pallas_src>
import jax
import jax.numpy as jnp
from jax import lax
from jax.experimental import pallas as pl
from jax.experimental.pallas import tpu as pltpu

VOCAB = 500
EMB = 100
HID = 128

# Per-buffer VMEM budget for the (T, BB, 4H) bf16 gate slab (the BlockSpec
# pipeline double-buffers it), used to cap the batch tile BB.
_GX_BUDGET_BYTES = 12 * 1024 * 1024
_VMEM_LIMIT_BYTES = 32 * 1024 * 1024


def _round_up(x, m):
    return (x + m - 1) // m * m


def _pick_bb(B, T):
    """Batch tile: as large as possible (<=128, multiple of 16 for bf16 tiles)
    while the double-buffered gate slab stays within the VMEM budget."""
    per_row = T * 4 * HID * 2          # bf16 bytes per batch row
    cap = (_GX_BUDGET_BYTES // per_row) // 16 * 16
    cap = max(16, min(128, cap))
    return min(cap, _round_up(B, 16))


def _lstm_attn_kernel(gx_ref, whh_ref, out_ref):
    """LSTM recurrence + attention for one batch tile.

    gx_ref : (T, BB, 4H) bf16  precomputed input-side gate projections
                               (embedding @ W_ih + b_ih + b_hh), time-major
    whh_ref: (H, 4H)     bf16  hidden->gates weights (gate order i, f, g, o)
    out_ref: (BB, H)     f32   product = attention_value * h_final (lane dense)
    """
    T, B, _ = gx_ref.shape
    H = whh_ref.shape[0]

    whh = whh_ref[...]  # bf16, loop-invariant; hoisted

    def step(t, carry):
        h, c, acc = carry  # f32 state (B, H)
        gates = gx_ref[t].astype(jnp.float32) + jnp.dot(
            h.astype(jnp.bfloat16), whh, preferred_element_type=jnp.float32)
        i = jax.nn.sigmoid(gates[:, 0 * H:1 * H])
        f = jax.nn.sigmoid(gates[:, 1 * H:2 * H])
        g = jnp.tanh(gates[:, 2 * H:3 * H])
        o = jax.nn.sigmoid(gates[:, 3 * H:4 * H])
        c_new = f * c + i * g
        h_new = o * jnp.tanh(c_new)
        return (h_new, c_new, acc + h_new)

    zeros = jnp.zeros((B, H), jnp.float32)
    # Full unroll only for tiny tiles; large BB would spill vregs otherwise.
    unroll = True if (T <= 16 and B <= 32) else 2
    h_fin, _c_fin, h_sum = lax.fori_loop(0, T, step, (zeros, zeros, zeros),
                                         unroll=unroll)

    # attention_value[b] = sum_t sum_d h_fin[b,d] * h_t[b,d]
    #                    = sum_d h_fin[b,d] * h_sum[b,d]
    attention_value = jnp.sum(h_fin * h_sum, axis=1, keepdims=True)  # (BB, 1)
    out_ref[...] = attention_value * h_fin                           # (BB, H)


@jax.jit
def forward(tokens, params):
    """tokens: (B, T) int32 token ids -> (B, 1) f32 logits."""
    B, T = tokens.shape

    # Fold embedding + input projection + biases into one gate table (V, 4H),
    # stored bf16 (halves HBM traffic / VMEM footprint; MXU is bf16-native).
    gate_table = (jnp.dot(params["emb_weight"], params["w_ih_t"],
                          preferred_element_type=jnp.float32)
                  + params["bias"]).astype(jnp.bfloat16)        # (V, 4H)
    # Gather time-major directly: no separate (B,T,4H) HBM transpose pass.
    gx_tb = gate_table[tokens.T]                                # (T, B, 4H) bf16
    # TODO(synk): move this gather fully in-kernel (the table is only ~0.5 MiB)
    # once a Mosaic row-gather on a V=500 VMEM table is validated.

    BB = _pick_bb(B, T)
    b_pad = _round_up(B, BB)
    if b_pad != B:
        gx_tb = jnp.pad(gx_tb, ((0, 0), (0, b_pad - B), (0, 0)))

    whh = params["w_hh_t"].astype(jnp.bfloat16)                 # (H, 4H)

    product = pl.pallas_call(
        _lstm_attn_kernel,
        out_shape=jax.ShapeDtypeStruct((b_pad, HID), jnp.float32),
        grid_spec=pltpu.PrefetchScalarGridSpec(
            num_scalar_prefetch=0,
            grid=(b_pad // BB,),
            in_specs=[
                pl.BlockSpec((T, BB, 4 * HID), lambda b: (0, b, 0)),
                pl.BlockSpec((HID, 4 * HID), lambda b: (0, 0)),
            ],
            out_specs=pl.BlockSpec((BB, HID), lambda b: (b, 0)),
        ),
        compiler_params=pltpu.CompilerParams(
            dimension_semantics=("parallel",),
            vmem_limit_bytes=_VMEM_LIMIT_BYTES),
    )(gx_tb, whh)

    # Final 128 -> 1 linear (+bias) is trivial; done wrapper-side so the
    # kernel's output store stays lane-dense.
    return product[:B] @ params["w_lin_t"] + params["b_lin"]


def init_params(key):
    ks = jax.random.split(key, 6)
    emb_w = 0.1 * jax.random.normal(ks[0], (VOCAB, EMB), jnp.float32)
    # PyTorch LSTM weights: weight_ih (4H, E), weight_hh (4H, H); stored here
    # pre-transposed ("input-major"), gate order i, f, g, o (same as torch).
    w_ih_t = 0.05 * jax.random.normal(ks[1], (EMB, 4 * HID), jnp.float32)
    w_hh_t = 0.05 * jax.random.normal(ks[2], (HID, 4 * HID), jnp.float32)
    b_ih = 0.05 * jax.random.normal(ks[3], (4 * HID,), jnp.float32)
    b_hh = 0.05 * jax.random.normal(ks[4], (4 * HID,), jnp.float32)
    bias = (b_ih + b_hh).reshape(1, 4 * HID)
    w_lin_t = 0.05 * jax.random.normal(ks[5], (HID, 1), jnp.float32)
    b_lin = jnp.zeros((1, 1), jnp.float32)
    return dict(emb_weight=emb_w, w_ih_t=w_ih_t, w_hh_t=w_hh_t, bias=bias,
                w_lin_t=w_lin_t, b_lin=b_lin)


def reference_forward(tokens, params):
    """Pure-JAX f32 reference mirroring the PyTorch forward."""
    emb = params["emb_weight"][tokens]                 # (B, T, E)
    B, T, _ = emb.shape
    h = jnp.zeros((B, HID), jnp.float32)
    c = jnp.zeros((B, HID), jnp.float32)
    outs = []
    for t in range(T):
        gates = emb[:, t, :] @ params["w_ih_t"] + h @ params["w_hh_t"] \
                + params["bias"]
        i = jax.nn.sigmoid(gates[:, 0 * HID:1 * HID])
        f = jax.nn.sigmoid(gates[:, 1 * HID:2 * HID])
        g = jnp.tanh(gates[:, 2 * HID:3 * HID])
        o = jax.nn.sigmoid(gates[:, 3 * HID:4 * HID])
        c = f * c + i * g
        h = o * jnp.tanh(c)
        outs.append(h)
    lstm_out = jnp.stack(outs, axis=1)                 # (B, T, H)
    score = jnp.sum(h[:, None, :] * lstm_out, axis=2)  # (B, T)
    attention_value = jnp.sum(score, axis=1, keepdims=True)  # (B, 1)
    product = attention_value * h                      # (B, H)
    return product @ params["w_lin_t"] + params["b_lin"]


if __name__ == "__main__":
    key = jax.random.PRNGKey(0)
    pkey, xkey = jax.random.split(key)
    params = init_params(pkey)

    B, T = 2, 8
    tokens = jax.random.randint(xkey, (B, T), 0, VOCAB, dtype=jnp.int32)

    out = forward(tokens, params)
    out = jax.block_until_ready(out)
    assert out.shape == (B, 1) and out.dtype == jnp.float32

    ref = reference_forward(tokens, params)
    assert jnp.allclose(out, ref, rtol=1e-2, atol=1e-2), (out, ref)

    print("KERNEL_OK")
</pallas_src>

<mosaic_0001>
module attributes {stable_mosaic.version = 11 : i64} {
  func.func @_lstm_attn_kernel(%arg0: i32, %arg1: memref<8x16x512xbf16, #tpu.memory_space<vmem>>, %arg2: memref<128x512xbf16, #tpu.memory_space<vmem>>, %arg3: memref<16x128xf32, #tpu.memory_space<vmem>>) attributes {dimension_semantics = [#tpu.dimension_semantics<parallel>], iteration_bounds = array<i64: 1>, scalar_prefetch = 0 : i64, scratch_operands = 0 : i64, tpu.core_type = #tpu.core_type<tc>, window_params = [{transform_indices = @transform_0, window_bounds = array<i64: 8, 16, 512>}, {pipeline_mode = #tpu.pipeline_mode<synchronous>, transform_indices = @transform_1, window_bounds = array<i64: 128, 512>}, {transform_indices = @transform_2, window_bounds = array<i64: 16, 128>}]} {
    %c0 = arith.constant 0 : index
    %c0_0 = arith.constant 0 : index
    %0 = vector.load %arg2[%c0, %c0_0] : memref<128x512xbf16, #tpu.memory_space<vmem>>, vector<128x512xbf16>
    %cst = arith.constant 0.000000e+00 : f32
    %1 = vector.broadcast %cst : f32 to vector<16x128xf32>
    %c0_i32 = arith.constant 0 : i32
    %2 = arith.index_cast %c0_i32 : i32 to index
    %c0_1 = arith.constant 0 : index
    %c0_2 = arith.constant 0 : index
    %3 = vector.load %arg1[%2, %c0_1, %c0_2] : memref<8x16x512xbf16, #tpu.memory_space<vmem>>, vector<1x16x512xbf16>
    %4 = vector.shape_cast %3 : vector<1x16x512xbf16> to vector<16x512xbf16>
    %5 = arith.extf %4 : vector<16x512xbf16> to vector<16x512xf32>
    %6 = arith.truncf %1 : vector<16x128xf32> to vector<16x128xbf16>
    %cst_3 = arith.constant dense<0.000000e+00> : vector<16x512xf32>
    %7 = tpu.matmul %6, %0, %cst_3 {dimension_numbers = #tpu.dot_dimension_numbers<[1], [0], [0], [1], [0, 0, 1, 1], [], []>} : vector<16x128xbf16>, vector<128x512xbf16>, vector<16x512xf32> -> vector<16x512xf32>
    %8 = arith.addf %5, %7 : vector<16x512xf32>
    %9 = vector.extract_strided_slice %8 {offsets = [0, 0], sizes = [16, 128], strides = [1, 1]} : vector<16x512xf32> to vector<16x128xf32>
    %10 = arith.negf %9 : vector<16x128xf32>
    %11 = math.exp %10 : vector<16x128xf32>
    %cst_4 = arith.constant 1.000000e+00 : f32
    %12 = vector.broadcast %cst_4 : f32 to vector<16x128xf32>
    %13 = arith.addf %12, %11 : vector<16x128xf32>
    %14 = arith.divf %12, %13 : vector<16x128xf32>
    %15 = vector.extract_strided_slice %8 {offsets = [0, 128], sizes = [16, 128], strides = [1, 1]} : vector<16x512xf32> to vector<16x128xf32>
    %16 = arith.negf %15 : vector<16x128xf32>
    %17 = math.exp %16 : vector<16x128xf32>
    %cst_5 = arith.constant 1.000000e+00 : f32
    %18 = vector.broadcast %cst_5 : f32 to vector<16x128xf32>
    %19 = arith.addf %18, %17 : vector<16x128xf32>
    %20 = arith.divf %18, %19 : vector<16x128xf32>
    %21 = vector.extract_strided_slice %8 {offsets = [0, 256], sizes = [16, 128], strides = [1, 1]} : vector<16x512xf32> to vector<16x128xf32>
    %22 = math.tanh %21 : vector<16x128xf32>
    %23 = vector.extract_strided_slice %8 {offsets = [0, 384], sizes = [16, 128], strides = [1, 1]} : vector<16x512xf32> to vector<16x128xf32>
    %24 = arith.negf %23 : vector<16x128xf32>
    %25 = math.exp %24 : vector<16x128xf32>
    %cst_6 = arith.constant 1.000000e+00 : f32
    %26 = vector.broadcast %cst_6 : f32 to vector<16x128xf32>
    %27 = arith.addf %26, %25 : vector<16x128xf32>
    %28 = arith.divf %26, %27 : vector<16x128xf32>
    %29 = arith.mulf %20, %1 : vector<16x128xf32>
    %30 = arith.mulf %14, %22 : vector<16x128xf32>
    %31 = arith.addf %29, %30 : vector<16x128xf32>
    %32 = math.tanh %31 : vector<16x128xf32>
    %33 = arith.mulf %28, %32 : vector<16x128xf32>
    %34 = arith.addf %1, %33 : vector<16x128xf32>
    %c1_i32 = arith.constant 1 : i32
    %35 = arith.index_cast %c1_i32 : i32 to index
    %c0_7 = arith.constant 0 : index
    %c0_8 = arith.constant 0 : index
    %36 = vector.load %arg1[%35, %c0_7, %c0_8] : memref<8x16x512xbf16, #tpu.memory_space<vmem>>, vector<1x16x512xbf16>
    %37 = vector.shape_cast %36 : vector<1x16x512xbf16> to vector<16x512xbf16>
    %38 = arith.extf %37 : vector<16x512xbf16> to vector<16x512xf32>
    %39 = arith.truncf %33 : vector<16x128xf32> to vector<16x128xbf16>
    %cst_9 = arith.constant dense<0.000000e+00> : vector<16x512xf32>
    %40 = tpu.matmul %39, %0, %cst_9 {dimension_numbers = #tpu.dot_dimension_numbers<[1], [0], [0], [1], [0, 0, 1, 1], [], []>} : vector<16x128xbf16>, vector<128x512xbf16>, vector<16x512xf32> -> vector<16x512xf32>
    %41 = arith.addf %38, %40 : vector<16x512xf32>
    %42 = vector.extract_strided_slice %41 {offsets = [0, 0], sizes = [16, 128], strides = [1, 1]} : vector<16x512xf32> to vector<16x128xf32>
    %43 = arith.negf %42 : vector<16x128xf32>
    %44 = math.exp %43 : vector<16x128xf32>
    %cst_10 = arith.constant 1.000000e+00 : f32
    %45 = vector.broadcast %cst_10 : f32 to vector<16x128xf32>
    %46 = arith.addf %45, %44 : vector<16x128xf32>
    %47 = arith.divf %45, %46 : vector<16x128xf32>
    %48 = vector.extract_strided_slice %41 {offsets = [0, 128], sizes = [16, 128], strides = [1, 1]} : vector<16x512xf32> to vector<16x128xf32>
    %49 = arith.negf %48 : vector<16x128xf32>
    %50 = math.exp %49 : vector<16x128xf32>
    %cst_11 = arith.constant 1.000000e+00 : f32
    %51 = vector.broadcast %cst_11 : f32 to vector<16x128xf32>
    %52 = arith.addf %51, %50 : vector<16x128xf32>
    %53 = arith.divf %51, %52 : vector<16x128xf32>
    %54 = vector.extract_strided_slice %41 {offsets = [0, 256], sizes = [16, 128], strides = [1, 1]} : vector<16x512xf32> to vector<16x128xf32>
    %55 = math.tanh %54 : vector<16x128xf32>
    %56 = vector.extract_strided_slice %41 {offsets = [0, 384], sizes = [16, 128], strides = [1, 1]} : vector<16x512xf32> to vector<16x128xf32>
    %57 = arith.negf %56 : vector<16x128xf32>
    %58 = math.exp %57 : vector<16x128xf32>
    %cst_12 = arith.constant 1.000000e+00 : f32
    %59 = vector.broadcast %cst_12 : f32 to vector<16x128xf32>
    %60 = arith.addf %59, %58 : vector<16x128xf32>
    %61 = arith.divf %59, %60 : vector<16x128xf32>
    %62 = arith.mulf %53, %31 : vector<16x128xf32>
    %63 = arith.mulf %47, %55 : vector<16x128xf32>
    %64 = arith.addf %62, %63 : vector<16x128xf32>
    %65 = math.tanh %64 : vector<16x128xf32>
    %66 = arith.mulf %61, %65 : vector<16x128xf32>
    %67 = arith.addf %34, %66 : vector<16x128xf32>
    %c2_i32 = arith.constant 2 : i32
    %68 = arith.index_cast %c2_i32 : i32 to index
    %c0_13 = arith.constant 0 : index
    %c0_14 = arith.constant 0 : index
    %69 = vector.load %arg1[%68, %c0_13, %c0_14] : memref<8x16x512xbf16, #tpu.memory_space<vmem>>, vector<1x16x512xbf16>
    %70 = vector.shape_cast %69 : vector<1x16x512xbf16> to vector<16x512xbf16>
    %71 = arith.extf %70 : vector<16x512xbf16> to vector<16x512xf32>
    %72 = arith.truncf %66 : vector<16x128xf32> to vector<16x128xbf16>
    %cst_15 = arith.constant dense<0.000000e+00> : vector<16x512xf32>
    %73 = tpu.matmul %72, %0, %cst_15 {dimension_numbers = #tpu.dot_dimension_numbers<[1], [0], [0], [1], [0, 0, 1, 1], [], []>} : vector<16x128xbf16>, vector<128x512xbf16>, vector<16x512xf32> -> vector<16x512xf32>
    %74 = arith.addf %71, %73 : vector<16x512xf32>
    %75 = vector.extract_strided_slice %74 {offsets = [0, 0], sizes = [16, 128], strides = [1, 1]} : vector<16x512xf32> to vector<16x128xf32>
    %76 = arith.negf %75 : vector<16x128xf32>
    %77 = math.exp %76 : vector<16x128xf32>
    %cst_16 = arith.constant 1.000000e+00 : f32
    %78 = vector.broadcast %cst_16 : f32 to vector<16x128xf32>
    %79 = arith.addf %78, %77 : vector<16x128xf32>
    %80 = arith.divf %78, %79 : vector<16x128xf32>
    %81 = vector.extract_strided_slice %74 {offsets = [0, 128], sizes = [16, 128], strides = [1, 1]} : vector<16x512xf32> to vector<16x128xf32>
    %82 = arith.negf %81 : vector<16x128xf32>
    %83 = math.exp %82 : vector<16x128xf32>
    %cst_17 = arith.constant 1.000000e+00 : f32
    %84 = vector.broadcast %cst_17 : f32 to vector<16x128xf32>
    %85 = arith.addf %84, %83 : vector<16x128xf32>
    %86 = arith.divf %84, %85 : vector<16x128xf32>
    %87 = vector.extract_strided_slice %74 {offsets = [0, 256], sizes = [16, 128], strides = [1, 1]} : vector<16x512xf32> to vector<16x128xf32>
    %88 = math.tanh %87 : vector<16x128xf32>
    %89 = vector.extract_strided_slice %74 {offsets = [0, 384], sizes = [16, 128], strides = [1, 1]} : vector<16x512xf32> to vector<16x128xf32>
    %90 = arith.negf %89 : vector<16x128xf32>
    %91 = math.exp %90 : vector<16x128xf32>
    %cst_18 = arith.constant 1.000000e+00 : f32
    %92 = vector.broadcast %cst_18 : f32 to vector<16x128xf32>
    %93 = arith.addf %92, %91 : vector<16x128xf32>
    %94 = arith.divf %92, %93 : vector<16x128xf32>
    %95 = arith.mulf %86, %64 : vector<16x128xf32>
    %96 = arith.mulf %80, %88 : vector<16x128xf32>
    %97 = arith.addf %95, %96 : vector<16x128xf32>
    %98 = math.tanh %97 : vector<16x128xf32>
    %99 = arith.mulf %94, %98 : vector<16x128xf32>
    %100 = arith.addf %67, %99 : vector<16x128xf32>
    %c3_i32 = arith.constant 3 : i32
    %101 = arith.index_cast %c3_i32 : i32 to index
    %c0_19 = arith.constant 0 : index
    %c0_20 = arith.constant 0 : index
    %102 = vector.load %arg1[%101, %c0_19, %c0_20] : memref<8x16x512xbf16, #tpu.memory_space<vmem>>, vector<1x16x512xbf16>
    %103 = vector.shape_cast %102 : vector<1x16x512xbf16> to vector<16x512xbf16>
    %104 = arith.extf %103 : vector<16x512xbf16> to vector<16x512xf32>
    %105 = arith.truncf %99 : vector<16x128xf32> to vector<16x128xbf16>
    %cst_21 = arith.constant dense<0.000000e+00> : vector<16x512xf32>
    %106 = tpu.matmul %105, %0, %cst_21 {dimension_numbers = #tpu.dot_dimension_numbers<[1], [0], [0], [1], [0, 0, 1, 1], [], []>} : vector<16x128xbf16>, vector<128x512xbf16>, vector<16x512xf32> -> vector<16x512xf32>
    %107 = arith.addf %104, %106 : vector<16x512xf32>
    %108 = vector.extract_strided_slice %107 {offsets = [0, 0], sizes = [16, 128], strides = [1, 1]} : vector<16x512xf32> to vector<16x128xf32>
    %109 = arith.negf %108 : vector<16x128xf32>
    %110 = math.exp %109 : vector<16x128xf32>
    %cst_22 = arith.constant 1.000000e+00 : f32
    %111 = vector.broadcast %cst_22 : f32 to vector<16x128xf32>
    %112 = arith.addf %111, %110 : vector<16x128xf32>
    %113 = arith.divf %111, %112 : vector<16x128xf32>
    %114 = vector.extract_strided_slice %107 {offsets = [0, 128], sizes = [16, 128], strides = [1, 1]} : vector<16x512xf32> to vector<16x128xf32>
    %115 = arith.negf %114 : vector<16x128xf32>
    %116 = math.exp %115 : vector<16x128xf32>
    %cst_23 = arith.constant 1.000000e+00 : f32
    %117 = vector.broadcast %cst_23 : f32 to vector<16x128xf32>
    %118 = arith.addf %117, %116 : vector<16x128xf32>
    %119 = arith.divf %117, %118 : vector<16x128xf32>
    %120 = vector.extract_strided_slice %107 {offsets = [0, 256], sizes = [16, 128], strides = [1, 1]} : vector<16x512xf32> to vector<16x128xf32>
    %121 = math.tanh %120 : vector<16x128xf32>
    %122 = vector.extract_strided_slice %107 {offsets = [0, 384], sizes = [16, 128], strides = [1, 1]} : vector<16x512xf32> to vector<16x128xf32>
    %123 = arith.negf %122 : vector<16x128xf32>
    %124 = math.exp %123 : vector<16x128xf32>
    %cst_24 = arith.constant 1.000000e+00 : f32
    %125 = vector.broadcast %cst_24 : f32 to vector<16x128xf32>
    %126 = arith.addf %125, %124 : vector<16x128xf32>
    %127 = arith.divf %125, %126 : vector<16x128xf32>
    %128 = arith.mulf %119, %97 : vector<16x128xf32>
    %129 = arith.mulf %113, %121 : vector<16x128xf32>
    %130 = arith.addf %128, %129 : vector<16x128xf32>
    %131 = math.tanh %130 : vector<16x128xf32>
    %132 = arith.mulf %127, %131 : vector<16x128xf32>
    %133 = arith.addf %100, %132 : vector<16x128xf32>
    %c4_i32 = arith.constant 4 : i32
    %134 = arith.index_cast %c4_i32 : i32 to index
    %c0_25 = arith.constant 0 : index
    %c0_26 = arith.constant 0 : index
    %135 = vector.load %arg1[%134, %c0_25, %c0_26] : memref<8x16x512xbf16, #tpu.memory_space<vmem>>, vector<1x16x512xbf16>
    %136 = vector.shape_cast %135 : vector<1x16x512xbf16> to vector<16x512xbf16>
    %137 = arith.extf %136 : vector<16x512xbf16> to vector<16x512xf32>
    %138 = arith.truncf %132 : vector<16x128xf32> to vector<16x128xbf16>
    %cst_27 = arith.constant dense<0.000000e+00> : vector<16x512xf32>
    %139 = tpu.matmul %138, %0, %cst_27 {dimension_numbers = #tpu.dot_dimension_numbers<[1], [0], [0], [1], [0, 0, 1, 1], [], []>} : vector<16x128xbf16>, vector<128x512xbf16>, vector<16x512xf32> -> vector<16x512xf32>
    %140 = arith.addf %137, %139 : vector<16x512xf32>
    %141 = vector.extract_strided_slice %140 {offsets = [0, 0], sizes = [16, 128], strides = [1, 1]} : vector<16x512xf32> to vector<16x128xf32>
    %142 = arith.negf %141 : vector<16x128xf32>
    %143 = math.exp %142 : vector<16x128xf32>
    %cst_28 = arith.constant 1.000000e+00 : f32
    %144 = vector.broadcast %cst_28 : f32 to vector<16x128xf32>
    %145 = arith.addf %144, %143 : vector<16x128xf32>
    %146 = arith.divf %144, %145 : vector<16x128xf32>
    %147 = vector.extract_strided_slice %140 {offsets = [0, 128], sizes = [16, 128], strides = [1, 1]} : vector<16x512xf32> to vector<16x128xf32>
    %148 = arith.negf %147 : vector<16x128xf32>
    %149 = math.exp %148 : vector<16x128xf32>
    %cst_29 = arith.constant 1.000000e+00 : f32
    %150 = vector.broadcast %cst_29 : f32 to vector<16x128xf32>
    %151 = arith.addf %150, %149 : vector<16x128xf32>
    %152 = arith.divf %150, %151 : vector<16x128xf32>
    %153 = vector.extract_strided_slice %140 {offsets = [0, 256], sizes = [16, 128], strides = [1, 1]} : vector<16x512xf32> to vector<16x128xf32>
    %154 = math.tanh %153 : vector<16x128xf32>
    %155 = vector.extract_strided_slice %140 {offsets = [0, 384], sizes = [16, 128], strides = [1, 1]} : vector<16x512xf32> to vector<16x128xf32>
    %156 = arith.negf %155 : vector<16x128xf32>
    %157 = math.exp %156 : vector<16x128xf32>
    %cst_30 = arith.constant 1.000000e+00 : f32
    %158 = vector.broadcast %cst_30 : f32 to vector<16x128xf32>
    %159 = arith.addf %158, %157 : vector<16x128xf32>
    %160 = arith.divf %158, %159 : vector<16x128xf32>
    %161 = arith.mulf %152, %130 : vector<16x128xf32>
    %162 = arith.mulf %146, %154 : vector<16x128xf32>
    %163 = arith.addf %161, %162 : vector<16x128xf32>
    %164 = math.tanh %163 : vector<16x128xf32>
    %165 = arith.mulf %160, %164 : vector<16x128xf32>
    %166 = arith.addf %133, %165 : vector<16x128xf32>
    %c5_i32 = arith.constant 5 : i32
    %167 = arith.index_cast %c5_i32 : i32 to index
    %c0_31 = arith.constant 0 : index
    %c0_32 = arith.constant 0 : index
    %168 = vector.load %arg1[%167, %c0_31, %c0_32] : memref<8x16x512xbf16, #tpu.memory_space<vmem>>, vector<1x16x512xbf16>
    %169 = vector.shape_cast %168 : vector<1x16x512xbf16> to vector<16x512xbf16>
    %170 = arith.extf %169 : vector<16x512xbf16> to vector<16x512xf32>
    %171 = arith.truncf %165 : vector<16x128xf32> to vector<16x128xbf16>
    %cst_33 = arith.constant dense<0.000000e+00> : vector<16x512xf32>
    %172 = tpu.matmul %171, %0, %cst_33 {dimension_numbers = #tpu.dot_dimension_numbers<[1], [0], [0], [1], [0, 0, 1, 1], [], []>} : vector<16x128xbf16>, vector<128x512xbf16>, vector<16x512xf32> -> vector<16x512xf32>
    %173 = arith.addf %170, %172 : vector<16x512xf32>
    %174 = vector.extract_strided_slice %173 {offsets = [0, 0], sizes = [16, 128], strides = [1, 1]} : vector<16x512xf32> to vector<16x128xf32>
    %175 = arith.negf %174 : vector<16x128xf32>
    %176 = math.exp %175 : vector<16x128xf32>
    %cst_34 = arith.constant 1.000000e+00 : f32
    %177 = vector.broadcast %cst_34 : f32 to vector<16x128xf32>
    %178 = arith.addf %177, %176 : vector<16x128xf32>
    %179 = arith.divf %177, %178 : vector<16x128xf32>
    %180 = vector.extract_strided_slice %173 {offsets = [0, 128], sizes = [16, 128], strides = [1, 1]} : vector<16x512xf32> to vector<16x128xf32>
    %181 = arith.negf %180 : vector<16x128xf32>
    %182 = math.exp %181 : vector<16x128xf32>
    %cst_35 = arith.constant 1.000000e+00 : f32
    %183 = vector.broadcast %cst_35 : f32 to vector<16x128xf32>
    %184 = arith.addf %183, %182 : vector<16x128xf32>
    %185 = arith.divf %183, %184 : vector<16x128xf32>
    %186 = vector.extract_strided_slice %173 {offsets = [0, 256], sizes = [16, 128], strides = [1, 1]} : vector<16x512xf32> to vector<16x128xf32>
    %187 = math.tanh %186 : vector<16x128xf32>
    %188 = vector.extract_strided_slice %173 {offsets = [0, 384], sizes = [16, 128], strides = [1, 1]} : vector<16x512xf32> to vector<16x128xf32>
    %189 = arith.negf %188 : vector<16x128xf32>
    %190 = math.exp %189 : vector<16x128xf32>
    %cst_36 = arith.constant 1.000000e+00 : f32
    %191 = vector.broadcast %cst_36 : f32 to vector<16x128xf32>
    %192 = arith.addf %191, %190 : vector<16x128xf32>
    %193 = arith.divf %191, %192 : vector<16x128xf32>
    %194 = arith.mulf %185, %163 : vector<16x128xf32>
    %195 = arith.mulf %179, %187 : vector<16x128xf32>
    %196 = arith.addf %194, %195 : vector<16x128xf32>
    %197 = math.tanh %196 : vector<16x128xf32>
    %198 = arith.mulf %193, %197 : vector<16x128xf32>
    %199 = arith.addf %166, %198 : vector<16x128xf32>
    %c6_i32 = arith.constant 6 : i32
    %200 = arith.index_cast %c6_i32 : i32 to index
    %c0_37 = arith.constant 0 : index
    %c0_38 = arith.constant 0 : index
    %201 = vector.load %arg1[%200, %c0_37, %c0_38] : memref<8x16x512xbf16, #tpu.memory_space<vmem>>, vector<1x16x512xbf16>
    %202 = vector.shape_cast %201 : vector<1x16x512xbf16> to vector<16x512xbf16>
    %203 = arith.extf %202 : vector<16x512xbf16> to vector<16x512xf32>
    %204 = arith.truncf %198 : vector<16x128xf32> to vector<16x128xbf16>
    %cst_39 = arith.constant dense<0.000000e+00> : vector<16x512xf32>
    %205 = tpu.matmul %204, %0, %cst_39 {dimension_numbers = #tpu.dot_dimension_numbers<[1], [0], [0], [1], [0, 0, 1, 1], [], []>} : vector<16x128xbf16>, vector<128x512xbf16>, vector<16x512xf32> -> vector<16x512xf32>
    %206 = arith.addf %203, %205 : vector<16x512xf32>
    %207 = vector.extract_strided_slice %206 {offsets = [0, 0], sizes = [16, 128], strides = [1, 1]} : vector<16x512xf32> to vector<16x128xf32>
    %208 = arith.negf %207 : vector<16x128xf32>
    %209 = math.exp %208 : vector<16x128xf32>
    %cst_40 = arith.constant 1.000000e+00 : f32
    %210 = vector.broadcast %cst_40 : f32 to vector<16x128xf32>
    %211 = arith.addf %210, %209 : vector<16x128xf32>
    %212 = arith.divf %210, %211 : vector<16x128xf32>
    %213 = vector.extract_strided_slice %206 {offsets = [0, 128], sizes = [16, 128], strides = [1, 1]} : vector<16x512xf32> to vector<16x128xf32>
    %214 = arith.negf %213 : vector<16x128xf32>
    %215 = math.exp %214 : vector<16x128xf32>
    %cst_41 = arith.constant 1.000000e+00 : f32
    %216 = vector.broadcast %cst_41 : f32 to vector<16x128xf32>
    %217 = arith.addf %216, %215 : vector<16x128xf32>
    %218 = arith.divf %216, %217 : vector<16x128xf32>
    %219 = vector.extract_strided_slice %206 {offsets = [0, 256], sizes = [16, 128], strides = [1, 1]} : vector<16x512xf32> to vector<16x128xf32>
    %220 = math.tanh %219 : vector<16x128xf32>
    %221 = vector.extract_strided_slice %206 {offsets = [0, 384], sizes = [16, 128], strides = [1, 1]} : vector<16x512xf32> to vector<16x128xf32>
    %222 = arith.negf %221 : vector<16x128xf32>
    %223 = math.exp %222 : vector<16x128xf32>
    %cst_42 = arith.constant 1.000000e+00 : f32
    %224 = vector.broadcast %cst_42 : f32 to vector<16x128xf32>
    %225 = arith.addf %224, %223 : vector<16x128xf32>
    %226 = arith.divf %224, %225 : vector<16x128xf32>
    %227 = arith.mulf %218, %196 : vector<16x128xf32>
    %228 = arith.mulf %212, %220 : vector<16x128xf32>
    %229 = arith.addf %227, %228 : vector<16x128xf32>
    %230 = math.tanh %229 : vector<16x128xf32>
    %231 = arith.mulf %226, %230 : vector<16x128xf32>
    %232 = arith.addf %199, %231 : vector<16x128xf32>
    %c7_i32 = arith.constant 7 : i32
    %233 = arith.index_cast %c7_i32 : i32 to index
    %c0_43 = arith.constant 0 : index
    %c0_44 = arith.constant 0 : index
    %234 = vector.load %arg1[%233, %c0_43, %c0_44] : memref<8x16x512xbf16, #tpu.memory_space<vmem>>, vector<1x16x512xbf16>
    %235 = vector.shape_cast %234 : vector<1x16x512xbf16> to vector<16x512xbf16>
    %236 = arith.extf %235 : vector<16x512xbf16> to vector<16x512xf32>
    %237 = arith.truncf %231 : vector<16x128xf32> to vector<16x128xbf16>
    %cst_45 = arith.constant dense<0.000000e+00> : vector<16x512xf32>
    %238 = tpu.matmul %237, %0, %cst_45 {dimension_numbers = #tpu.dot_dimension_numbers<[1], [0], [0], [1], [0, 0, 1, 1], [], []>} : vector<16x128xbf16>, vector<128x512xbf16>, vector<16x512xf32> -> vector<16x512xf32>
    %239 = arith.addf %236, %238 : vector<16x512xf32>
    %240 = vector.extract_strided_slice %239 {offsets = [0, 0], sizes = [16, 128], strides = [1, 1]} : vector<16x512xf32> to vector<16x128xf32>
    %241 = arith.negf %240 : vector<16x128xf32>
    %242 = math.exp %241 : vector<16x128xf32>
    %cst_46 = arith.constant 1.000000e+00 : f32
    %243 = vector.broadcast %cst_46 : f32 to vector<16x128xf32>
    %244 = arith.addf %243, %242 : vector<16x128xf32>
    %245 = arith.divf %243, %244 : vector<16x128xf32>
    %246 = vector.extract_strided_slice %239 {offsets = [0, 128], sizes = [16, 128], strides = [1, 1]} : vector<16x512xf32> to vector<16x128xf32>
    %247 = arith.negf %246 : vector<16x128xf32>
    %248 = math.exp %247 : vector<16x128xf32>
    %cst_47 = arith.constant 1.000000e+00 : f32
    %249 = vector.broadcast %cst_47 : f32 to vector<16x128xf32>
    %250 = arith.addf %249, %248 : vector<16x128xf32>
    %251 = arith.divf %249, %250 : vector<16x128xf32>
    %252 = vector.extract_strided_slice %239 {offsets = [0, 256], sizes = [16, 128], strides = [1, 1]} : vector<16x512xf32> to vector<16x128xf32>
    %253 = math.tanh %252 : vector<16x128xf32>
    %254 = vector.extract_strided_slice %239 {offsets = [0, 384], sizes = [16, 128], strides = [1, 1]} : vector<16x512xf32> to vector<16x128xf32>
    %255 = arith.negf %254 : vector<16x128xf32>
    %256 = math.exp %255 : vector<16x128xf32>
    %cst_48 = arith.constant 1.000000e+00 : f32
    %257 = vector.broadcast %cst_48 : f32 to vector<16x128xf32>
    %258 = arith.addf %257, %256 : vector<16x128xf32>
    %259 = arith.divf %257, %258 : vector<16x128xf32>
    %260 = arith.mulf %251, %229 : vector<16x128xf32>
    %261 = arith.mulf %245, %253 : vector<16x128xf32>
    %262 = arith.addf %260, %261 : vector<16x128xf32>
    %263 = math.tanh %262 : vector<16x128xf32>
    %264 = arith.mulf %259, %263 : vector<16x128xf32>
    %265 = arith.addf %232, %264 : vector<16x128xf32>
    %c8_i32 = arith.constant 8 : i32
    %266 = arith.mulf %264, %265 : vector<16x128xf32>
    %cst_49 = arith.constant dense<0.000000e+00> : vector<16xf32>
    %267 = vector.multi_reduction <add>, %266, %cst_49 [1] : vector<16x128xf32> to vector<16xf32>
    %268 = vector.shape_cast %267 : vector<16xf32> to vector<16x1xf32>
    %269 = vector.broadcast %268 : vector<16x1xf32> to vector<16x128xf32>
    %270 = arith.mulf %269, %264 : vector<16x128xf32>
    %c0_50 = arith.constant 0 : index
    %c0_51 = arith.constant 0 : index
    %271 = vector.load %arg3[%c0_50, %c0_51] : memref<16x128xf32, #tpu.memory_space<vmem>>, vector<16x128xf32>
    tpu.vector_store %arg3[%c0_50, %c0_51], %270 {strides = array<i32>} : memref<16x128xf32, #tpu.memory_space<vmem>>, vector<16x128xf32>,
    return
  }
  func.func @transform_0(%arg0: i32) -> (i32, i32, i32) {
    %c0_i32 = arith.constant 0 : i32
    %c0_i32_0 = arith.constant 0 : i32
    %c0_i32_1 = arith.constant 0 : i32
    return %c0_i32, %arg0, %c0_i32_0 : i32, i32, i32
  }
  func.func @transform_1(%arg0: i32) -> (i32, i32) {
    %c0_i32 = arith.constant 0 : i32
    %c0_i32_0 = arith.constant 0 : i32
    %c0_i32_1 = arith.constant 0 : i32
    return %c0_i32, %c0_i32_0 : i32, i32
  }
  func.func @transform_2(%arg0: i32) -> (i32, i32) {
    %c0_i32 = arith.constant 0 : i32
    %c0_i32_0 = arith.constant 0 : i32
    return %arg0, %c0_i32 : i32, i32
  }
}

</mosaic_0001>

<llo_original>
// kernel: forward.1
$region0: #{forward.1}
  #allocation0 [shape = 'u32[]', space=smem, size = 0x4, offset = 0x4, fixed_abs, tag = 'smem constant byte address 0x4 - core index']
  #allocation1 [shape = 'u32[72,128]{1,0:T(1,128)}', space=vmem, size = 0x9000, scoped, tag = 'internal scratch']
  %s0 = inlined_call_operand.vmem [shape: bf16[8,16,512], index: 0, kind: input, shape index: {}]
  %s1 = inlined_call_operand.vmem [shape: bf16[128,512], index: 1, kind: input, shape index: {}]
  %s2 = inlined_call_operand.vmem [shape: f32[16,128], index: 2, kind: output, shape index: {}]
  %s3 = sld [smem:[#allocation0]]
  $region18: #{forward.1} parent=0
    _
  %s5 = ssub.s32 1, %s3
  %s6 = scalar_select 0, %s5, %s3
  // Predicated region
  $region2: #{forward.1} parent=0 // pred_check
    _
  $region3: #{forward.1} parent=0 // pred_check_branch
    %8 = sbr.rel (0) target = $region5
  $region4: #{forward.1} parent=0 // pred_region
    _
  $region5: #{forward.1} parent=0 // pred_fallthru
    _
  // Predicated region
  $region6: #{forward.1} parent=0 // pred_check
    _
  $region7: #{forward.1} parent=0 // pred_check_branch
    %10 = sbr.rel (0) target = $region9
  $region8: #{forward.1} parent=0 // pred_region
    _
  $region9: #{forward.1} parent=0 // pred_fallthru
    _
  %v12 = vld [vmem:[%s1] sm:$0xff]
  %v13 = vld [vmem:[%s1 + $0x8] sm:$0xff]
  %v14 = vld [vmem:[%s1 + $0x10] sm:$0xff]
  %v15 = vld [vmem:[%s1 + $0x18] sm:$0xff]
  %v16 = vld [vmem:[%s1 + $0x20] sm:$0xff]
  %v17 = vld [vmem:[%s1 + $0x28] sm:$0xff]
  %v18 = vld [vmem:[%s1 + $0x30] sm:$0xff]
  %v19 = vld [vmem:[%s1 + $0x38] sm:$0xff]
  %v20 = vld [vmem:[%s1 + $0x40] sm:$0xff]
  %v21 = vld [vmem:[%s1 + $0x48] sm:$0xff]
  %v22 = vld [vmem:[%s1 + $0x50] sm:$0xff]
  %v23 = vld [vmem:[%s1 + $0x58] sm:$0xff]
  %v24 = vld [vmem:[%s1 + $0x60] sm:$0xff]
  %v25 = vld [vmem:[%s1 + $0x68] sm:$0xff]
  %v26 = vld [vmem:[%s1 + $0x70] sm:$0xff]
  %v27 = vld [vmem:[%s1 + $0x78] sm:$0xff]
  %v28 = vld [vmem:[%s1 + $0x80] sm:$0xff]
  %v29 = vld [vmem:[%s1 + $0x88] sm:$0xff]
  %v30 = vld [vmem:[%s1 + $0x90] sm:$0xff]
  %v31 = vld [vmem:[%s1 + $0x98] sm:$0xff]
  %v32 = vld [vmem:[%s1 + $0xa0] sm:$0xff]
  %v33 = vld [vmem:[%s1 + $0xa8] sm:$0xff]
  %v34 = vld [vmem:[%s1 + $0xb0] sm:$0xff]
  %v35 = vld [vmem:[%s1 + $0xb8] sm:$0xff]
  %v36 = vld [vmem:[%s1 + $0xc0] sm:$0xff]
  %v37 = vld [vmem:[%s1 + $0xc8] sm:$0xff]
  %v38 = vld [vmem:[%s1 + $0xd0] sm:$0xff]
  %v39 = vld [vmem:[%s1 + $0xd8] sm:$0xff]
  %v40 = vld [vmem:[%s1 + $0xe0] sm:$0xff]
  %v41 = vld [vmem:[%s1 + $0xe8] sm:$0xff]
  %v42 = vld [vmem:[%s1 + $0xf0] sm:$0xff]
  %v43 = vld [vmem:[%s1 + $0xf8] sm:$0xff]
  %v44 = vld [vmem:[%s0] sm:$0xff]
  %v45 = vld [vmem:[%s0 + $0x8] sm:$0xff]
  %v46 = vld [vmem:[%s0 + $0x10] sm:$0xff]
  %v47 = vld [vmem:[%s0 + $0x18] sm:$0xff]
  %v48 = vunpack.c.l.bf16 %v44
  %v49 = vunpack.c.h.bf16 %v44
  %v50 = vunpack.c.l.bf16 %v45
  %v51 = vunpack.c.h.bf16 %v45
  %v52 = vunpack.c.l.bf16 %v46
  %v53 = vunpack.c.h.bf16 %v46
  %v54 = vunpack.c.l.bf16 %v47
  %v55 = vunpack.c.h.bf16 %v47
  %v88 = vunpack.c.l.b16 %v12
  %v89 = vunpack.c.h.b16 %v12
  %v90 = vunpack.c.l.b16 %v13
  %v91 = vunpack.c.h.b16 %v13
  %v92 = vunpack.c.l.b16 %v14
  %v93 = vunpack.c.h.b16 %v14
  %v94 = vunpack.c.l.b16 %v15
  %v95 = vunpack.c.h.b16 %v15
  %v96 = vunpack.c.l.b16 %v16
  %v97 = vunpack.c.h.b16 %v16
  %v98 = vunpack.c.l.b16 %v17
  %v99 = vunpack.c.h.b16 %v17
  %v100 = vunpack.c.l.b16 %v18
  %v101 = vunpack.c.h.b16 %v18
  %v102 = vunpack.c.l.b16 %v19
  %v103 = vunpack.c.h.b16 %v19
  %v104 = vunpack.c.l.b16 %v20
  %v105 = vunpack.c.h.b16 %v20
  %v106 = vunpack.c.l.b16 %v21
  %v107 = vunpack.c.h.b16 %v21
  %v108 = vunpack.c.l.b16 %v22
  %v109 = vunpack.c.h.b16 %v22
  %v110 = vunpack.c.l.b16 %v23
  %v111 = vunpack.c.h.b16 %v23
  %v112 = vunpack.c.l.b16 %v24
  %v113 = vunpack.c.h.b16 %v24
  %v114 = vunpack.c.l.b16 %v25
  %v115 = vunpack.c.h.b16 %v25
  %v116 = vunpack.c.l.b16 %v26
  %v117 = vunpack.c.h.b16 %v26
  %v118 = vunpack.c.l.b16 %v27
  %v119 = vunpack.c.h.b16 %v27
  %v120 = vunpack.c.l.b16 %v28
  %v121 = vunpack.c.h.b16 %v28
  %v122 = vunpack.c.l.b16 %v29
  %v123 = vunpack.c.h.b16 %v29
  %v124 = vunpack.c.l.b16 %v30
  %v125 = vunpack.c.h.b16 %v30
  %v126 = vunpack.c.l.b16 %v31
  %v127 = vunpack.c.h.b16 %v31
  %v128 = vunpack.c.l.b16 %v32
  %v129 = vunpack.c.h.b16 %v32
  %v130 = vunpack.c.l.b16 %v33
  %v131 = vunpack.c.h.b16 %v33
  %v132 = vunpack.c.l.b16 %v34
  %v133 = vunpack.c.h.b16 %v34
  %v134 = vunpack.c.l.b16 %v35
  %v135 = vunpack.c.h.b16 %v35
  %v136 = vunpack.c.l.b16 %v36
  %v137 = vunpack.c.h.b16 %v36
  %v138 = vunpack.c.l.b16 %v37
  %v139 = vunpack.c.h.b16 %v37
  %v140 = vunpack.c.l.b16 %v38
  %v141 = vunpack.c.h.b16 %v38
  %v142 = vunpack.c.l.b16 %v39
  %v143 = vunpack.c.h.b16 %v39
  %v144 = vunpack.c.l.b16 %v40
  %v145 = vunpack.c.h.b16 %v40
  %v146 = vunpack.c.l.b16 %v41
  %v147 = vunpack.c.h.b16 %v41
  %v148 = vunpack.c.l.b16 %v42
  %v149 = vunpack.c.h.b16 %v42
  %v150 = vunpack.c.l.b16 %v43
  %v151 = vunpack.c.h.b16 %v43
  %v152 = vpack.c.b16 %v92, %v88
  %v153 = vpack.c.b16 %v93, %v89
  %v154 = vpack.c.b16 %v94, %v90
  %v155 = vpack.c.b16 %v95, %v91
  %v156 = vpack.c.b16 %v100, %v96
  %v157 = vpack.c.b16 %v101, %v97
  %v158 = vpack.c.b16 %v102, %v98
  %v159 = vpack.c.b16 %v103, %v99
  %v160 = vpack.c.b16 %v108, %v104
  %v161 = vpack.c.b16 %v109, %v105
  %v162 = vpack.c.b16 %v110, %v106
  %v163 = vpack.c.b16 %v111, %v107
  %v164 = vpack.c.b16 %v116, %v112
  %v165 = vpack.c.b16 %v117, %v113
  %v166 = vpack.c.b16 %v118, %v114
  %v167 = vpack.c.b16 %v119, %v115
  %v168 = vpack.c.b16 %v124, %v120
  %v169 = vpack.c.b16 %v125, %v121
  %v170 = vpack.c.b16 %v126, %v122
  %v171 = vpack.c.b16 %v127, %v123
  %v172 = vpack.c.b16 %v132, %v128
  %v173 = vpack.c.b16 %v133, %v129
  %v174 = vpack.c.b16 %v134, %v130
  %v175 = vpack.c.b16 %v135, %v131
  %v176 = vpack.c.b16 %v140, %v136
  %v177 = vpack.c.b16 %v141, %v137
  %v178 = vpack.c.b16 %v142, %v138
  %v179 = vpack.c.b16 %v143, %v139
  %v180 = vpack.c.b16 %v148, %v144
  %v181 = vpack.c.b16 %v149, %v145
  %v182 = vpack.c.b16 %v150, %v146
  %v183 = vpack.c.b16 %v151, %v147
  %216 = vmatpush.bf16.msra.mxu0 %v180
  %217 = vmatpush.bf16.msra.mxu0 %v176
  %218 = vmatpush.bf16.msra.mxu0 %v172
  %219 = vmatpush.bf16.msra.mxu0 %v168
  %220 = vmatpush.bf16.msra.mxu0 %v164
  %221 = vmatpush.bf16.msra.mxu0 %v160
  %222 = vmatpush.bf16.msra.mxu0 %v156
  %223 = vmatpush.bf16.msra.mxu0 %v152
  %224 = vmatmul.bf16.gmra.mxu0 0
  %v225 = vpop.f32.mrf.mxu0
  %v226 = vadd.f32 0.0, %v225
  %v227 = vpop.f32.mrf.mxu0
  %v228 = vadd.f32 0.0, %v227
  %229 = vdwg.mxu0
  %230 = vmatpush.bf16.msra.mxu0 %v181
  %231 = vmatpush.bf16.msra.mxu0 %v177
  %232 = vmatpush.bf16.msra.mxu0 %v173
  %233 = vmatpush.bf16.msra.mxu0 %v169
  %234 = vmatpush.bf16.msra.mxu0 %v165
  %235 = vmatpush.bf16.msra.mxu0 %v161
  %236 = vmatpush.bf16.msra.mxu0 %v157
  %237 = vmatpush.bf16.msra.mxu0 %v153
  %238 = vmatmul.bf16.gmra.mxu0 0
  %v239 = vpop.f32.mrf.mxu0
  %v240 = vadd.f32 0.0, %v239
  %v241 = vpop.f32.mrf.mxu0
  %v242 = vadd.f32 0.0, %v241
  %243 = vdwg.mxu0
  %244 = vmatpush.bf16.msra.mxu0 %v182
  %245 = vmatpush.bf16.msra.mxu0 %v178
  %246 = vmatpush.bf16.msra.mxu0 %v174
  %247 = vmatpush.bf16.msra.mxu0 %v170
  %248 = vmatpush.bf16.msra.mxu0 %v166
  %249 = vmatpush.bf16.msra.mxu0 %v162
  %250 = vmatpush.bf16.msra.mxu0 %v158
  %251 = vmatpush.bf16.msra.mxu0 %v154
  %252 = vmatmul.bf16.gmra.mxu0 0
  %v253 = vpop.f32.mrf.mxu0
  %v254 = vadd.f32 0.0, %v253
  %v255 = vpop.f32.mrf.mxu0
  %v256 = vadd.f32 0.0, %v255
  %257 = vdwg.mxu0
  %258 = vmatpush.bf16.msra.mxu0 %v183
  %259 = vmatpush.bf16.msra.mxu0 %v179
  %260 = vmatpush.bf16.msra.mxu0 %v175
  %261 = vmatpush.bf16.msra.mxu0 %v171
  %262 = vmatpush.bf16.msra.mxu0 %v167
  %263 = vmatpush.bf16.msra.mxu0 %v163
  %264 = vmatpush.bf16.msra.mxu0 %v159
  %265 = vmatpush.bf16.msra.mxu0 %v155
  %266 = vmatmul.bf16.gmra.mxu0 0
  %v267 = vpop.f32.mrf.mxu0
  %v268 = vadd.f32 0.0, %v267
  %v269 = vpop.f32.mrf.mxu0
  %v270 = vadd.f32 0.0, %v269
  %271 = vdwg.mxu0
  %v272 = vadd.f32 %v48, %v226
  %v273 = vadd.f32 %v49, %v240
  %v274 = vadd.f32 %v50, %v254
  %v275 = vadd.f32 %v51, %v268
  %v276 = vadd.f32 %v52, %v228
  %v277 = vadd.f32 %v53, %v242
  %v278 = vadd.f32 %v54, %v256
  %v279 = vadd.f32 %v55, %v270
  %v280 = vxor.u32 %v272, 2147483648
  %v281 = vxor.u32 %v276, 2147483648
  %v282 = vmul.f32 %v280, 1.442695
  %v283 = vpow.pop %v282
  %v284 = vmul.f32 %v281, 1.442695
  %v285 = vpow.pop %v284
  %v286 = vadd.f32 %v283, 1.0
  %v287 = vadd.f32 %v285, 1.0
  %v288 = vrcp.pop %v286
  %v289 = vmul.f32 %v286, %v288
  %v290 = vsub.f32 1.0, %v289
  %v291 = vmul.f32 %v288, %v290
  %v292 = vadd.f32 %v288, %v291
  %vm293 = vweird.f32 %v286
  %vm294 = vweird.f32 %v288
  %vm295 = vmor %vm293, %vm294
  %v296 = vsel %vm295, %v288, %v292
  %v297 = vand.u32 2147483647, %v286
  %vm298 = vcmp.eq.f32.partialorder %v297, 8.507059e+37
  %v299 = vand.u32 %v286, 2147483648
  %v300 = vor.u32 1.1754944e-38, %v299
  %v301 = vsel %vm298, %v300, %v296
  %v302 = vmul.f32 1.0, %v301
  %v303 = vrcp.pop %v287
  %v304 = vmul.f32 %v287, %v303
  %v305 = vsub.f32 1.0, %v304
  %v306 = vmul.f32 %v303, %v305
  %v307 = vadd.f32 %v303, %v306
  %vm308 = vweird.f32 %v287
  %vm309 = vweird.f32 %v303
  %vm310 = vmor %vm308, %vm309
  %v311 = vsel %vm310, %v303, %v307
  %v312 = vand.u32 2147483647, %v287
  %vm313 = vcmp.eq.f32.partialorder %v312, 8.507059e+37
  %v314 = vand.u32 %v287, 2147483648
  %v315 = vor.u32 1.1754944e-38, %v314
  %v316 = vsel %vm313, %v315, %v311
  %v317 = vmul.f32 1.0, %v316
  %v318 = vxor.u32 %v273, 2147483648
  %v319 = vxor.u32 %v277, 2147483648
  %v320 = vmul.f32 %v318, 1.442695
  %v321 = vpow.pop %v320
  %v322 = vmul.f32 %v319, 1.442695
  %v323 = vpow.pop %v322
  %v324 = vadd.f32 %v321, 1.0
  %v325 = vadd.f32 %v323, 1.0
  %v326 = vrcp.pop %v324
  %v327 = vmul.f32 %v324, %v326
  %v328 = vsub.f32 1.0, %v327
  %v329 = vmul.f32 %v326, %v328
  %v330 = vadd.f32 %v326, %v329
  %vm331 = vweird.f32 %v324
  %vm332 = vweird.f32 %v326
  %vm333 = vmor %vm331, %vm332
  %v334 = vsel %vm333, %v326, %v330
  %v335 = vand.u32 2147483647, %v324
  %vm336 = vcmp.eq.f32.partialorder %v335, 8.507059e+37
  %v337 = vand.u32 %v324, 2147483648
  %v338 = vor.u32 1.1754944e-38, %v337
  %v339 = vsel %vm336, %v338, %v334
  %v340 = vmul.f32 1.0, %v339
  %v341 = vrcp.pop %v325
  %v342 = vmul.f32 %v325, %v341
  %v343 = vsub.f32 1.0, %v342
  %v344 = vmul.f32 %v341, %v343
  %v345 = vadd.f32 %v341, %v344
  %vm346 = vweird.f32 %v325
  %vm347 = vweird.f32 %v341
  %vm348 = vmor %vm346, %vm347
  %v349 = vsel %vm348, %v341, %v345
  %v350 = vand.u32 2147483647, %v325
  %vm351 = vcmp.eq.f32.partialorder %v350, 8.507059e+37
  %v352 = vand.u32 %v325, 2147483648
  %v353 = vor.u32 1.1754944e-38, %v352
  %v354 = vsel %vm351, %v353, %v349
  %v355 = vmul.f32 1.0, %v354
  %v356 = vtanh.pop %v274
  %v357 = vtanh.pop %v278
  %v358 = vxor.u32 %v275, 2147483648
  %v359 = vxor.u32 %v279, 2147483648
  %v360 = vmul.f32 %v358, 1.442695
  %v361 = vpow.pop %v360
  %v362 = vmul.f32 %v359, 1.442695
  %v363 = vpow.pop %v362
  %v364 = vadd.f32 %v361, 1.0
  %v365 = vadd.f32 %v363, 1.0
  %v366 = vrcp.pop %v364
  %v367 = vmul.f32 %v364, %v366
  %v368 = vsub.f32 1.0, %v367
  %v369 = vmul.f32 %v366, %v368
  %v370 = vadd.f32 %v366, %v369
  %vm371 = vweird.f32 %v364
  %vm372 = vweird.f32 %v366
  %vm373 = vmor %vm371, %vm372
  %v374 = vsel %vm373, %v366, %v370
  %v375 = vand.u32 2147483647, %v364
  %vm376 = vcmp.eq.f32.partialorder %v375, 8.507059e+37
  %v377 = vand.u32 %v364, 2147483648
  %v378 = vor.u32 1.1754944e-38, %v377
  %v379 = vsel %vm376, %v378, %v374
  %v380 = vmul.f32 1.0, %v379
  %v381 = vrcp.pop %v365
  %v382 = vmul.f32 %v365, %v381
  %v383 = vsub.f32 1.0, %v382
  %v384 = vmul.f32 %v381, %v383
  %v385 = vadd.f32 %v381, %v384
  %vm386 = vweird.f32 %v365
  %vm387 = vweird.f32 %v381
  %vm388 = vmor %vm386, %vm387
  %v389 = vsel %vm388, %v381, %v385
  %v390 = vand.u32 2147483647, %v365
  %vm391 = vcmp.eq.f32.partialorder %v390, 8.507059e+37
  %v392 = vand.u32 %v365, 2147483648
  %v393 = vor.u32 1.1754944e-38, %v392
  %v394 = vsel %vm391, %v393, %v389
  %v395 = vmul.f32 1.0, %v394
  %v396 = vmul.f32 %v340, 0.0
  %v397 = vmul.f32 %v355, 0.0
  %v398 = vmul.f32 %v302, %v356
  %v399 = vmul.f32 %v317, %v357
  %v400 = vadd.f32 %v396, %v398
  %v401 = vadd.f32 %v397, %v399
  %v402 = vtanh.pop %v400
  %v403 = vtanh.pop %v401
  %v404 = vmul.f32 %v380, %v402
  %v405 = vmul.f32 %v395, %v403
  %v406 = vadd.f32 %v404, 0.0
  %v407 = vadd.f32 %v405, 0.0
  %s408 = scalar_lea.vmem %s0, 32
  %v409 = vld [vmem:[%s408] sm:$0xff]
  %v410 = vld [vmem:[%s408 + $0x8] sm:$0xff]
  %v411 = vld [vmem:[%s408 + $0x10] sm:$0xff]
  %v412 = vld [vmem:[%s408 + $0x18] sm:$0xff]
  %v413 = vunpack.c.l.bf16 %v409
  %v414 = vunpack.c.h.bf16 %v409
  %v415 = vunpack.c.l.bf16 %v410
  %v416 = vunpack.c.h.bf16 %v410
  %v417 = vunpack.c.l.bf16 %v411
  %v418 = vunpack.c.h.bf16 %v411
  %v419 = vunpack.c.l.bf16 %v412
  %v420 = vunpack.c.h.bf16 %v412
  %v421 = vpack.c.bf16 %v405, %v404
  %422 = vmatpush.bf16.msra.mxu0 %v180
  %423 = vmatpush.bf16.msra.mxu0 %v176
  %424 = vmatpush.bf16.msra.mxu0 %v172
  %425 = vmatpush.bf16.msra.mxu0 %v168
  %426 = vmatpush.bf16.msra.mxu0 %v164
  %427 = vmatpush.bf16.msra.mxu0 %v160
  %428 = vmatpush.bf16.msra.mxu0 %v156
  %429 = vmatpush.bf16.msra.mxu0 %v152
  %430 = vmatmul.bf16.gmra.mxu0 %v421
  %v431 = vpop.f32.mrf.mxu0
  %v432 = vadd.f32 0.0, %v431
  %v433 = vpop.f32.mrf.mxu0
  %v434 = vadd.f32 0.0, %v433
  %435 = vdwg.mxu0
  %436 = vmatpush.bf16.msra.mxu0 %v181
  %437 = vmatpush.bf16.msra.mxu0 %v177
  %438 = vmatpush.bf16.msra.mxu0 %v173
  %439 = vmatpush.bf16.msra.mxu0 %v169
  %440 = vmatpush.bf16.msra.mxu0 %v165
  %441 = vmatpush.bf16.msra.mxu0 %v161
  %442 = vmatpush.bf16.msra.mxu0 %v157
  %443 = vmatpush.bf16.msra.mxu0 %v153
  %444 = vmatmul.bf16.gmra.mxu0 %v421
  %v445 = vpop.f32.mrf.mxu0
  %v446 = vadd.f32 0.0, %v445
  %v447 = vpop.f32.mrf.mxu0
  %v448 = vadd.f32 0.0, %v447
  %449 = vdwg.mxu0
  %450 = vmatpush.bf16.msra.mxu0 %v182
  %451 = vmatpush.bf16.msra.mxu0 %v178
  %452 = vmatpush.bf16.msra.mxu0 %v174
  %453 = vmatpush.bf16.msra.mxu0 %v170
  %454 = vmatpush.bf16.msra.mxu0 %v166
  %455 = vmatpush.bf16.msra.mxu0 %v162
  %456 = vmatpush.bf16.msra.mxu0 %v158
  %457 = vmatpush.bf16.msra.mxu0 %v154
  %458 = vmatmul.bf16.gmra.mxu0 %v421
  %v459 = vpop.f32.mrf.mxu0
  %v460 = vadd.f32 0.0, %v459
  %v461 = vpop.f32.mrf.mxu0
  %v462 = vadd.f32 0.0, %v461
  %463 = vdwg.mxu0
  %464 = vmatpush.bf16.msra.mxu0 %v183
  %465 = vmatpush.bf16.msra.mxu0 %v179
  %466 = vmatpush.bf16.msra.mxu0 %v175
  %467 = vmatpush.bf16.msra.mxu0 %v171
  %468 = vmatpush.bf16.msra.mxu0 %v167
  %469 = vmatpush.bf16.msra.mxu0 %v163
  %470 = vmatpush.bf16.msra.mxu0 %v159
  %471 = vmatpush.bf16.msra.mxu0 %v155
  %472 = vmatmul.bf16.gmra.mxu0 %v421
  %v473 = vpop.f32.mrf.mxu0
  %v474 = vadd.f32 0.0, %v473
  %v475 = vpop.f32.mrf.mxu0
  %v476 = vadd.f32 0.0, %v475
  %477 = vdwg.mxu0
  %v478 = vadd.f32 %v413, %v432
  %v479 = vadd.f32 %v414, %v446
  %v480 = vadd.f32 %v415, %v460
  %v481 = vadd.f32 %v416, %v474
  %v482 = vadd.f32 %v417, %v434
  %v483 = vadd.f32 %v418, %v448
  %v484 = vadd.f32 %v419, %v462
  %v485 = vadd.f32 %v420, %v476
  %v486 = vxor.u32 %v478, 2147483648
  %v487 = vxor.u32 %v482, 2147483648
  %v488 = vmul.f32 %v486, 1.442695
  %v489 = vpow.pop %v488
  %v490 = vmul.f32 %v487, 1.442695
  %v491 = vpow.pop %v490
  %v492 = vadd.f32 %v489, 1.0
  %v493 = vadd.f32 %v491, 1.0
  %v494 = vrcp.pop %v492
  %v495 = vmul.f32 %v492, %v494
  %v496 = vsub.f32 1.0, %v495
  %v497 = vmul.f32 %v494, %v496
  %v498 = vadd.f32 %v494, %v497
  %vm499 = vweird.f32 %v492
  %vm500 = vweird.f32 %v494
  %vm501 = vmor %vm499, %vm500
  %v502 = vsel %vm501, %v494, %v498
  %v503 = vand.u32 2147483647, %v492
  %vm504 = vcmp.eq.f32.partialorder %v503, 8.507059e+37
  %v505 = vand.u32 %v492, 2147483648
  %v506 = vor.u32 1.1754944e-38, %v505
  %v507 = vsel %vm504, %v506, %v502
  %v508 = vmul.f32 1.0, %v507
  %v509 = vrcp.pop %v493
  %v510 = vmul.f32 %v493, %v509
  %v511 = vsub.f32 1.0, %v510
  %v512 = vmul.f32 %v509, %v511
  %v513 = vadd.f32 %v509, %v512
  %vm514 = vweird.f32 %v493
  %vm515 = vweird.f32 %v509
  %vm516 = vmor %vm514, %vm515
  %v517 = vsel %vm516, %v509, %v513
  %v518 = vand.u32 2147483647, %v493
  %vm519 = vcmp.eq.f32.partialorder %v518, 8.507059e+37
  %v520 = vand.u32 %v493, 2147483648
  %v521 = vor.u32 1.1754944e-38, %v520
  %v522 = vsel %vm519, %v521, %v517
  %v523 = vmul.f32 1.0, %v522
  %v524 = vxor.u32 %v479, 2147483648
  %v525 = vxor.u32 %v483, 2147483648
  %v526 = vmul.f32 %v524, 1.442695
  %v527 = vpow.pop %v526
  %v528 = vmul.f32 %v525, 1.442695
  %v529 = vpow.pop %v528
  %v530 = vadd.f32 %v527, 1.0
  %v531 = vadd.f32 %v529, 1.0
  %v532 = vrcp.pop %v530
  %v533 = vmul.f32 %v530, %v532
  %v534 = vsub.f32 1.0, %v533
  %v535 = vmul.f32 %v532, %v534
  %v536 = vadd.f32 %v532, %v535
  %vm537 = vweird.f32 %v530
  %vm538 = vweird.f32 %v532
  %vm539 = vmor %vm537, %vm538
  %v540 = vsel %vm539, %v532, %v536
  %v541 = vand.u32 2147483647, %v530
  %vm542 = vcmp.eq.f32.partialorder %v541, 8.507059e+37
  %v543 = vand.u32 %v530, 2147483648
  %v544 = vor.u32 1.1754944e-38, %v543
  %v545 = vsel %vm542, %v544, %v540
  %v546 = vmul.f32 1.0, %v545
  %v547 = vrcp.pop %v531
  %v548 = vmul.f32 %v531, %v547
  %v549 = vsub.f32 1.0, %v548
  %v550 = vmul.f32 %v547, %v549
  %v551 = vadd.f32 %v547, %v550
  %vm552 = vweird.f32 %v531
  %vm553 = vweird.f32 %v547
  %vm554 = vmor %vm552, %vm553
  %v555 = vsel %vm554, %v547, %v551
  %v556 = vand.u32 2147483647, %v531
  %vm557 = vcmp.eq.f32.partialorder %v556, 8.507059e+37
  %v558 = vand.u32 %v531, 2147483648
  %v559 = vor.u32 1.1754944e-38, %v558
  %v560 = vsel %vm557, %v559, %v555
  %v561 = vmul.f32 1.0, %v560
  %v562 = vtanh.pop %v480
  %v563 = vtanh.pop %v484
  %v564 = vxor.u32 %v481, 2147483648
  %v565 = vxor.u32 %v485, 2147483648
  %v566 = vmul.f32 %v564, 1.442695
  %v567 = vpow.pop %v566
  %v568 = vmul.f32 %v565, 1.442695
  %v569 = vpow.pop %v568
  %v570 = vadd.f32 %v567, 1.0
  %v571 = vadd.f32 %v569, 1.0
  %v572 = vrcp.pop %v570
  %v573 = vmul.f32 %v570, %v572
  %v574 = vsub.f32 1.0, %v573
  %v575 = vmul.f32 %v572, %v574
  %v576 = vadd.f32 %v572, %v575
  %vm577 = vweird.f32 %v570
  %vm578 = vweird.f32 %v572
  %vm579 = vmor %vm577, %vm578
  %v580 = vsel %vm579, %v572, %v576
  %v581 = vand.u32 2147483647, %v570
  %vm582 = vcmp.eq.f32.partialorder %v581, 8.507059e+37
  %v583 = vand.u32 %v570, 2147483648
  %v584 = vor.u32 1.1754944e-38, %v583
  %v585 = vsel %vm582, %v584, %v580
  %v586 = vmul.f32 1.0, %v585
  %v587 = vrcp.pop %v571
  %v588 = vmul.f32 %v571, %v587
  %v589 = vsub.f32 1.0, %v588
  %v590 = vmul.f32 %v587, %v589
  %v591 = vadd.f32 %v587, %v590
  %vm592 = vweird.f32 %v571
  %vm593 = vweird.f32 %v587
  %vm594 = vmor %vm592, %vm593
  %v595 = vsel %vm594, %v587, %v591
  %v596 = vand.u32 2147483647, %v571
  %vm597 = vcmp.eq.f32.partialorder %v596, 8.507059e+37
  %v598 = vand.u32 %v571, 2147483648
  %v599 = vor.u32 1.1754944e-38, %v598
  %v600 = vsel %vm597, %v599, %v595
  %v601 = vmul.f32 1.0, %v600
  %v602 = vmul.f32 %v546, %v400
  %v603 = vmul.f32 %v561, %v401
  %v604 = vmul.f32 %v508, %v562
  %v605 = vmul.f32 %v523, %v563
  %v606 = vadd.f32 %v602, %v604
  %v607 = vadd.f32 %v603, %v605
  %v608 = vtanh.pop %v606
  %v609 = vtanh.pop %v607
  %v610 = vmul.f32 %v586, %v608
  %v611 = vmul.f32 %v601, %v609
  %v612 = vadd.f32 %v406, %v610
  %v613 = vadd.f32 %v407, %v611
  %s614 = scalar_lea.vmem %s0, 64
  %v615 = vld [vmem:[%s614] sm:$0xff]
  %v616 = vld [vmem:[%s614 + $0x8] sm:$0xff]
  %v617 = vld [vmem:[%s614 + $0x10] sm:$0xff]
  %v618 = vld [vmem:[%s614 + $0x18] sm:$0xff]
  %v619 = vunpack.c.l.bf16 %v615
  %v620 = vunpack.c.h.bf16 %v615
  %v621 = vunpack.c.l.bf16 %v616
  %v622 = vunpack.c.h.bf16 %v616
  %v623 = vunpack.c.l.bf16 %v617
  %v624 = vunpack.c.h.bf16 %v617
  %v625 = vunpack.c.l.bf16 %v618
  %v626 = vunpack.c.h.bf16 %v618
  %v627 = vpack.c.bf16 %v611, %v610
  %628 = vmatpush.bf16.msra.mxu0 %v180
  %629 = vmatpush.bf16.msra.mxu0 %v176
  %630 = vmatpush.bf16.msra.mxu0 %v172
  %631 = vmatpush.bf16.msra.mxu0 %v168
  %632 = vmatpush.bf16.msra.mxu0 %v164
  %633 = vmatpush.bf16.msra.mxu0 %v160
  %634 = vmatpush.bf16.msra.mxu0 %v156
  %635 = vmatpush.bf16.msra.mxu0 %v152
  %636 = vmatmul.bf16.gmra.mxu0 %v627
  %v637 = vpop.f32.mrf.mxu0
  %v638 = vadd.f32 0.0, %v637
  %v639 = vpop.f32.mrf.mxu0
  %v640 = vadd.f32 0.0, %v639
  %641 = vdwg.mxu0
  %642 = vmatpush.bf16.msra.mxu0 %v181
  %643 = vmatpush.bf16.msra.mxu0 %v177
  %644 = vmatpush.bf16.msra.mxu0 %v173
  %645 = vmatpush.bf16.msra.mxu0 %v169
  %646 = vmatpush.bf16.msra.mxu0 %v165
  %647 = vmatpush.bf16.msra.mxu0 %v161
  %648 = vmatpush.bf16.msra.mxu0 %v157
  %649 = vmatpush.bf16.msra.mxu0 %v153
  %650 = vmatmul.bf16.gmra.mxu0 %v627
  %v651 = vpop.f32.mrf.mxu0
  %v652 = vadd.f32 0.0, %v651
  %v653 = vpop.f32.mrf.mxu0
  %v654 = vadd.f32 0.0, %v653
  %655 = vdwg.mxu0
  %656 = vmatpush.bf16.msra.mxu0 %v182
  %657 = vmatpush.bf16.msra.mxu0 %v178
  %658 = vmatpush.bf16.msra.mxu0 %v174
  %659 = vmatpush.bf16.msra.mxu0 %v170
  %660 = vmatpush.bf16.msra.mxu0 %v166
  %661 = vmatpush.bf16.msra.mxu0 %v162
  %662 = vmatpush.bf16.msra.mxu0 %v158
  %663 = vmatpush.bf16.msra.mxu0 %v154
  %664 = vmatmul.bf16.gmra.mxu0 %v627
  %v665 = vpop.f32.mrf.mxu0
  %v666 = vadd.f32 0.0, %v665
  %v667 = vpop.f32.mrf.mxu0
  %v668 = vadd.f32 0.0, %v667
  %669 = vdwg.mxu0
  %670 = vmatpush.bf16.msra.mxu0 %v183
  %671 = vmatpush.bf16.msra.mxu0 %v179
  %672 = vmatpush.bf16.msra.mxu0 %v175
  %673 = vmatpush.bf16.msra.mxu0 %v171
  %674 = vmatpush.bf16.msra.mxu0 %v167
  %675 = vmatpush.bf16.msra.mxu0 %v163
  %676 = vmatpush.bf16.msra.mxu0 %v159
  %677 = vmatpush.bf16.msra.mxu0 %v155
  %678 = vmatmul.bf16.gmra.mxu0 %v627
  %v679 = vpop.f32.mrf.mxu0
  %v680 = vadd.f32 0.0, %v679
  %v681 = vpop.f32.mrf.mxu0
  %v682 = vadd.f32 0.0, %v681
  %683 = vdwg.mxu0
  %v684 = vadd.f32 %v619, %v638
  %v685 = vadd.f32 %v620, %v652
  %v686 = vadd.f32 %v621, %v666
  %v687 = vadd.f32 %v622, %v680
  %v688 = vadd.f32 %v623, %v640
  %v689 = vadd.f32 %v624, %v654
  %v690 = vadd.f32 %v625, %v668
  %v691 = vadd.f32 %v626, %v682
  %v692 = vxor.u32 %v684, 2147483648
  %v693 = vxor.u32 %v688, 2147483648
  %v694 = vmul.f32 %v692, 1.442695
  %v695 = vpow.pop %v694
  %v696 = vmul.f32 %v693, 1.442695
  %v697 = vpow.pop %v696
  %v698 = vadd.f32 %v695, 1.0
  %v699 = vadd.f32 %v697, 1.0
  %v700 = vrcp.pop %v698
  %v701 = vmul.f32 %v698, %v700
  %v702 = vsub.f32 1.0, %v701
  %v703 = vmul.f32 %v700, %v702
  %v704 = vadd.f32 %v700, %v703
  %vm705 = vweird.f32 %v698
  %vm706 = vweird.f32 %v700
  %vm707 = vmor %vm705, %vm706
  %v708 = vsel %vm707, %v700, %v704
  %v709 = vand.u32 2147483647, %v698
  %vm710 = vcmp.eq.f32.partialorder %v709, 8.507059e+37
  %v711 = vand.u32 %v698, 2147483648
  %v712 = vor.u32 1.1754944e-38, %v711
  %v713 = vsel %vm710, %v712, %v708
  %v714 = vmul.f32 1.0, %v713
  %v715 = vrcp.pop %v699
  %v716 = vmul.f32 %v699, %v715
  %v717 = vsub.f32 1.0, %v716
  %v718 = vmul.f32 %v715, %v717
  %v719 = vadd.f32 %v715, %v718
  %vm720 = vweird.f32 %v699
  %vm721 = vweird.f32 %v715
  %vm722 = vmor %vm720, %vm721
  %v723 = vsel %vm722, %v715, %v719
  %v724 = vand.u32 2147483647, %v699
  %vm725 = vcmp.eq.f32.partialorder %v724, 8.507059e+37
  %v726 = vand.u32 %v699, 2147483648
  %v727 = vor.u32 1.1754944e-38, %v726
  %v728 = vsel %vm725, %v727, %v723
  %v729 = vmul.f32 1.0, %v728
  %v730 = vxor.u32 %v685, 2147483648
  %v731 = vxor.u32 %v689, 2147483648
  %v732 = vmul.f32 %v730, 1.442695
  %v733 = vpow.pop %v732
  %v734 = vmul.f32 %v731, 1.442695
  %v735 = vpow.pop %v734
  %v736 = vadd.f32 %v733, 1.0
  %v737 = vadd.f32 %v735, 1.0
  %v738 = vrcp.pop %v736
  %v739 = vmul.f32 %v736, %v738
  %v740 = vsub.f32 1.0, %v739
  %v741 = vmul.f32 %v738, %v740
  %v742 = vadd.f32 %v738, %v741
  %vm743 = vweird.f32 %v736
  %vm744 = vweird.f32 %v738
  %vm745 = vmor %vm743, %vm744
  %v746 = vsel %vm745, %v738, %v742
  %v747 = vand.u32 2147483647, %v736
  %vm748 = vcmp.eq.f32.partialorder %v747, 8.507059e+37
  %v749 = vand.u32 %v736, 2147483648
  %v750 = vor.u32 1.1754944e-38, %v749
  %v751 = vsel %vm748, %v750, %v746
  %v752 = vmul.f32 1.0, %v751
  %v753 = vrcp.pop %v737
  %v754 = vmul.f32 %v737, %v753
  %v755 = vsub.f32 1.0, %v754
  %v756 = vmul.f32 %v753, %v755
  %v757 = vadd.f32 %v753, %v756
  %vm758 = vweird.f32 %v737
  %vm759 = vweird.f32 %v753
  %vm760 = vmor %vm758, %vm759
  %v761 = vsel %vm760, %v753, %v757
  %v762 = vand.u32 2147483647, %v737
  %vm763 = vcmp.eq.f32.partialorder %v762, 8.507059e+37
  %v764 = vand.u32 %v737, 2147483648
  %v765 = vor.u32 1.1754944e-38, %v764
  %v766 = vsel %vm763, %v765, %v761
  %v767 = vmul.f32 1.0, %v766
  %v768 = vtanh.pop %v686
  %v769 = vtanh.pop %v690
  %v770 = vxor.u32 %v687, 2147483648
  %v771 = vxor.u32 %v691, 2147483648
  %v772 = vmul.f32 %v770, 1.442695
  %v773 = vpow.pop %v772
  %v774 = vmul.f32 %v771, 1.442695
  %v775 = vpow.pop %v774
  %v776 = vadd.f32 %v773, 1.0
  %v777 = vadd.f32 %v775, 1.0
  %v778 = vrcp.pop %v776
  %v779 = vmul.f32 %v776, %v778
  %v780 = vsub.f32 1.0, %v779
  %v781 = vmul.f32 %v778, %v780
  %v782 = vadd.f32 %v778, %v781
  %vm783 = vweird.f32 %v776
  %vm784 = vweird.f32 %v778
  %vm785 = vmor %vm783, %vm784
  %v786 = vsel %vm785, %v778, %v782
  %v787 = vand.u32 2147483647, %v776
  %vm788 = vcmp.eq.f32.partialorder %v787, 8.507059e+37
  %v789 = vand.u32 %v776, 2147483648
  %v790 = vor.u32 1.1754944e-38, %v789
  %v791 = vsel %vm788, %v790, %v786
  %v792 = vmul.f32 1.0, %v791
  %v793 = vrcp.pop %v777
  %v794 = vmul.f32 %v777, %v793
  %v795 = vsub.f32 1.0, %v794
  %v796 = vmul.f32 %v793, %v795
  %v797 = vadd.f32 %v793, %v796
  %vm798 = vweird.f32 %v777
  %vm799 = vweird.f32 %v793
  %vm800 = vmor %vm798, %vm799
  %v801 = vsel %vm800, %v793, %v797
  %v802 = vand.u32 2147483647, %v777
  %vm803 = vcmp.eq.f32.partialorder %v802, 8.507059e+37
  %v804 = vand.u32 %v777, 2147483648
  %v805 = vor.u32 1.1754944e-38, %v804
  %v806 = vsel %vm803, %v805, %v801
  %v807 = vmul.f32 1.0, %v806
  %v808 = vmul.f32 %v752, %v606
  %v809 = vmul.f32 %v767, %v607
  %v810 = vmul.f32 %v714, %v768
  %v811 = vmul.f32 %v729, %v769
  %v812 = vadd.f32 %v808, %v810
  %v813 = vadd.f32 %v809, %v811
  %v814 = vtanh.pop %v812
  %v815 = vtanh.pop %v813
  %v816 = vmul.f32 %v792, %v814
  %v817 = vmul.f32 %v807, %v815
  %v818 = vadd.f32 %v612, %v816
  %v819 = vadd.f32 %v613, %v817
  %s820 = scalar_lea.vmem %s0, 96
  %v821 = vld [vmem:[%s820] sm:$0xff]
  %v822 = vld [vmem:[%s820 + $0x8] sm:$0xff]
  %v823 = vld [vmem:[%s820 + $0x10] sm:$0xff]
  %v824 = vld [vmem:[%s820 + $0x18] sm:$0xff]
  %v825 = vunpack.c.l.bf16 %v821
  %v826 = vunpack.c.h.bf16 %v821
  %v827 = vunpack.c.l.bf16 %v822
  %v828 = vunpack.c.h.bf16 %v822
  %v829 = vunpack.c.l.bf16 %v823
  %v830 = vunpack.c.h.bf16 %v823
  %v831 = vunpack.c.l.bf16 %v824
  %v832 = vunpack.c.h.bf16 %v824
  %v833 = vpack.c.bf16 %v817, %v816
  %834 = vmatpush.bf16.msra.mxu0 %v180
  %835 = vmatpush.bf16.msra.mxu0 %v176
  %836 = vmatpush.bf16.msra.mxu0 %v172
  %837 = vmatpush.bf16.msra.mxu0 %v168
  %838 = vmatpush.bf16.msra.mxu0 %v164
  %839 = vmatpush.bf16.msra.mxu0 %v160
  %840 = vmatpush.bf16.msra.mxu0 %v156
  %841 = vmatpush.bf16.msra.mxu0 %v152
  %842 = vmatmul.bf16.gmra.mxu0 %v833
  %v843 = vpop.f32.mrf.mxu0
  %v844 = vadd.f32 0.0, %v843
  %v845 = vpop.f32.mrf.mxu0
  %v846 = vadd.f32 0.0, %v845
  %847 = vdwg.mxu0
  %848 = vmatpush.bf16.msra.mxu0 %v181
  %849 = vmatpush.bf16.msra.mxu0 %v177
  %850 = vmatpush.bf16.msra.mxu0 %v173
  %851 = vmatpush.bf16.msra.mxu0 %v169
  %852 = vmatpush.bf16.msra.mxu0 %v165
  %853 = vmatpush.bf16.msra.mxu0 %v161
  %854 = vmatpush.bf16.msra.mxu0 %v157
  %855 = vmatpush.bf16.msra.mxu0 %v153
  %856 = vmatmul.bf16.gmra.mxu0 %v833
  %v857 = vpop.f32.mrf.mxu0
  %v858 = vadd.f32 0.0, %v857
  %v859 = vpop.f32.mrf.mxu0
  %v860 = vadd.f32 0.0, %v859
  %861 = vdwg.mxu0
  %862 = vmatpush.bf16.msra.mxu0 %v182
  %863 = vmatpush.bf16.msra.mxu0 %v178
  %864 = vmatpush.bf16.msra.mxu0 %v174
  %865 = vmatpush.bf16.msra.mxu0 %v170
  %866 = vmatpush.bf16.msra.mxu0 %v166
  %867 = vmatpush.bf16.msra.mxu0 %v162
  %868 = vmatpush.bf16.msra.mxu0 %v158
  %869 = vmatpush.bf16.msra.mxu0 %v154
  %870 = vmatmul.bf16.gmra.mxu0 %v833
  %v871 = vpop.f32.mrf.mxu0
  %v872 = vadd.f32 0.0, %v871
  %v873 = vpop.f32.mrf.mxu0
  %v874 = vadd.f32 0.0, %v873
  %875 = vdwg.mxu0
  %876 = vmatpush.bf16.msra.mxu0 %v183
  %877 = vmatpush.bf16.msra.mxu0 %v179
  %878 = vmatpush.bf16.msra.mxu0 %v175
  %879 = vmatpush.bf16.msra.mxu0 %v171
  %880 = vmatpush.bf16.msra.mxu0 %v167
  %881 = vmatpush.bf16.msra.mxu0 %v163
  %882 = vmatpush.bf16.msra.mxu0 %v159
  %883 = vmatpush.bf16.msra.mxu0 %v155
  %884 = vmatmul.bf16.gmra.mxu0 %v833
  %v885 = vpop.f32.mrf.mxu0
  %v886 = vadd.f32 0.0, %v885
  %v887 = vpop.f32.mrf.mxu0
  %v888 = vadd.f32 0.0, %v887
  %889 = vdwg.mxu0
  %v890 = vadd.f32 %v825, %v844
  %v891 = vadd.f32 %v826, %v858
  %v892 = vadd.f32 %v827, %v872
  %v893 = vadd.f32 %v828, %v886
  %v894 = vadd.f32 %v829, %v846
  %v895 = vadd.f32 %v830, %v860
  %v896 = vadd.f32 %v831, %v874
  %v897 = vadd.f32 %v832, %v888
  %v898 = vxor.u32 %v890, 2147483648
  %v899 = vxor.u32 %v894, 2147483648
  %v900 = vmul.f32 %v898, 1.442695
  %v901 = vpow.pop %v900
  %v902 = vmul.f32 %v899, 1.442695
  %v903 = vpow.pop %v902
  %v904 = vadd.f32 %v901, 1.0
  %v905 = vadd.f32 %v903, 1.0
  %v906 = vrcp.pop %v904
  %v907 = vmul.f32 %v904, %v906
  %v908 = vsub.f32 1.0, %v907
  %v909 = vmul.f32 %v906, %v908
  %v910 = vadd.f32 %v906, %v909
  %vm911 = vweird.f32 %v904
  %vm912 = vweird.f32 %v906
  %vm913 = vmor %vm911, %vm912
  %v914 = vsel %vm913, %v906, %v910
  %v915 = vand.u32 2147483647, %v904
  %vm916 = vcmp.eq.f32.partialorder %v915, 8.507059e+37
  %v917 = vand.u32 %v904, 2147483648
  %v918 = vor.u32 1.1754944e-38, %v917
  %v919 = vsel %vm916, %v918, %v914
  %v920 = vmul.f32 1.0, %v919
  %v921 = vrcp.pop %v905
  %v922 = vmul.f32 %v905, %v921
  %v923 = vsub.f32 1.0, %v922
  %v924 = vmul.f32 %v921, %v923
  %v925 = vadd.f32 %v921, %v924
  %vm926 = vweird.f32 %v905
  %vm927 = vweird.f32 %v921
  %vm928 = vmor %vm926, %vm927
  %v929 = vsel %vm928, %v921, %v925
  %v930 = vand.u32 2147483647, %v905
  %vm931 = vcmp.eq.f32.partialorder %v930, 8.507059e+37
  %v932 = vand.u32 %v905, 2147483648
  %v933 = vor.u32 1.1754944e-38, %v932
  %v934 = vsel %vm931, %v933, %v929
  %v935 = vmul.f32 1.0, %v934
  %v936 = vxor.u32 %v891, 2147483648
  %v937 = vxor.u32 %v895, 2147483648
  %v938 = vmul.f32 %v936, 1.442695
  %v939 = vpow.pop %v938
  %v940 = vmul.f32 %v937, 1.442695
  %v941 = vpow.pop %v940
  %v942 = vadd.f32 %v939, 1.0
  %v943 = vadd.f32 %v941, 1.0
  %v944 = vrcp.pop %v942
  %v945 = vmul.f32 %v942, %v944
  %v946 = vsub.f32 1.0, %v945
  %v947 = vmul.f32 %v944, %v946
  %v948 = vadd.f32 %v944, %v947
  %vm949 = vweird.f32 %v942
  %vm950 = vweird.f32 %v944
  %vm951 = vmor %vm949, %vm950
  %v952 = vsel %vm951, %v944, %v948
  %v953 = vand.u32 2147483647, %v942
  %vm954 = vcmp.eq.f32.partialorder %v953, 8.507059e+37
  %v955 = vand.u32 %v942, 2147483648
  %v956 = vor.u32 1.1754944e-38, %v955
  %v957 = vsel %vm954, %v956, %v952
  %v958 = vmul.f32 1.0, %v957
  %v959 = vrcp.pop %v943
  %v960 = vmul.f32 %v943, %v959
  %v961 = vsub.f32 1.0, %v960
  %v962 = vmul.f32 %v959, %v961
  %v963 = vadd.f32 %v959, %v962
  %vm964 = vweird.f32 %v943
  %vm965 = vweird.f32 %v959
  %vm966 = vmor %vm964, %vm965
  %v967 = vsel %vm966, %v959, %v963
  %v968 = vand.u32 2147483647, %v943
  %vm969 = vcmp.eq.f32.partialorder %v968, 8.507059e+37
  %v970 = vand.u32 %v943, 2147483648
  %v971 = vor.u32 1.1754944e-38, %v970
  %v972 = vsel %vm969, %v971, %v967
  %v973 = vmul.f32 1.0, %v972
  %v974 = vtanh.pop %v892
  %v975 = vtanh.pop %v896
  %v976 = vxor.u32 %v893, 2147483648
  %v977 = vxor.u32 %v897, 2147483648
  %v978 = vmul.f32 %v976, 1.442695
  %v979 = vpow.pop %v978
  %v980 = vmul.f32 %v977, 1.442695
  %v981 = vpow.pop %v980
  %v982 = vadd.f32 %v979, 1.0
  %v983 = vadd.f32 %v981, 1.0
  %v984 = vrcp.pop %v982
  %v985 = vmul.f32 %v982, %v984
  %v986 = vsub.f32 1.0, %v985
  %v987 = vmul.f32 %v984, %v986
  %v988 = vadd.f32 %v984, %v987
  %vm989 = vweird.f32 %v982
  %vm990 = vweird.f32 %v984
  %vm991 = vmor %vm989, %vm990
  %v992 = vsel %vm991, %v984, %v988
  %v993 = vand.u32 2147483647, %v982
  %vm994 = vcmp.eq.f32.partialorder %v993, 8.507059e+37
  %v995 = vand.u32 %v982, 2147483648
  %v996 = vor.u32 1.1754944e-38, %v995
  %v997 = vsel %vm994, %v996, %v992
  %v998 = vmul.f32 1.0, %v997
  %v999 = vrcp.pop %v983
  %v1000 = vmul.f32 %v983, %v999
  %v1001 = vsub.f32 1.0, %v1000
  %v1002 = vmul.f32 %v999, %v1001
  %v1003 = vadd.f32 %v999, %v1002
  %vm1004 = vweird.f32 %v983
  %vm1005 = vweird.f32 %v999
  %vm1006 = vmor %vm1004, %vm1005
  %v1007 = vsel %vm1006, %v999, %v1003
  %v1008 = vand.u32 2147483647, %v983
  %vm1009 = vcmp.eq.f32.partialorder %v1008, 8.507059e+37
  %v1010 = vand.u32 %v983, 2147483648
  %v1011 = vor.u32 1.1754944e-38, %v1010
  %v1012 = vsel %vm1009, %v1011, %v1007
  %v1013 = vmul.f32 1.0, %v1012
  %v1014 = vmul.f32 %v958, %v812
  %v1015 = vmul.f32 %v973, %v813
  %v1016 = vmul.f32 %v920, %v974
  %v1017 = vmul.f32 %v935, %v975
  %v1018 = vadd.f32 %v1014, %v1016
  %v1019 = vadd.f32 %v1015, %v1017
  %v1020 = vtanh.pop %v1018
  %v1021 = vtanh.pop %v1019
  %v1022 = vmul.f32 %v998, %v1020
  %v1023 = vmul.f32 %v1013, %v1021
  %v1024 = vadd.f32 %v818, %v1022
  %v1025 = vadd.f32 %v819, %v1023
  %s1026 = scalar_lea.vmem %s0, 128
  %v1027 = vld [vmem:[%s1026] sm:$0xff]
  %v1028 = vld [vmem:[%s1026 + $0x8] sm:$0xff]
  %v1029 = vld [vmem:[%s1026 + $0x10] sm:$0xff]
  %v1030 = vld [vmem:[%s1026 + $0x18] sm:$0xff]
  %v1031 = vunpack.c.l.bf16 %v1027
  %v1032 = vunpack.c.h.bf16 %v1027
  %v1033 = vunpack.c.l.bf16 %v1028
  %v1034 = vunpack.c.h.bf16 %v1028
  %v1035 = vunpack.c.l.bf16 %v1029
  %v1036 = vunpack.c.h.bf16 %v1029
  %v1037 = vunpack.c.l.bf16 %v1030
  %v1038 = vunpack.c.h.bf16 %v1030
  %v1039 = vpack.c.bf16 %v1023, %v1022
  %1040 = vmatpush.bf16.msra.mxu0 %v180
  %1041 = vmatpush.bf16.msra.mxu0 %v176
  %1042 = vmatpush.bf16.msra.mxu0 %v172
  %1043 = vmatpush.bf16.msra.mxu0 %v168
  %1044 = vmatpush.bf16.msra.mxu0 %v164
  %1045 = vmatpush.bf16.msra.mxu0 %v160
  %1046 = vmatpush.bf16.msra.mxu0 %v156
  %1047 = vmatpush.bf16.msra.mxu0 %v152
  %1048 = vmatmul.bf16.gmra.mxu0 %v1039
  %v1049 = vpop.f32.mrf.mxu0
  %v1050 = vadd.f32 0.0, %v1049
  %v1051 = vpop.f32.mrf.mxu0
  %v1052 = vadd.f32 0.0, %v1051
  %1053 = vdwg.mxu0
  %1054 = vmatpush.bf16.msra.mxu0 %v181
  %1055 = vmatpush.bf16.msra.mxu0 %v177
  %1056 = vmatpush.bf16.msra.mxu0 %v173
  %1057 = vmatpush.bf16.msra.mxu0 %v169
  %1058 = vmatpush.bf16.msra.mxu0 %v165
  %1059 = vmatpush.bf16.msra.mxu0 %v161
  %1060 = vmatpush.bf16.msra.mxu0 %v157
  %1061 = vmatpush.bf16.msra.mxu0 %v153
  %1062 = vmatmul.bf16.gmra.mxu0 %v1039
  %v1063 = vpop.f32.mrf.mxu0
  %v1064 = vadd.f32 0.0, %v1063
  %v1065 = vpop.f32.mrf.mxu0
  %v1066 = vadd.f32 0.0, %v1065
  %1067 = vdwg.mxu0
  %1068 = vmatpush.bf16.msra.mxu0 %v182
  %1069 = vmatpush.bf16.msra.mxu0 %v178
  %1070 = vmatpush.bf16.msra.mxu0 %v174
  %1071 = vmatpush.bf16.msra.mxu0 %v170
  %1072 = vmatpush.bf16.msra.mxu0 %v166
  %1073 = vmatpush.bf16.msra.mxu0 %v162
  %1074 = vmatpush.bf16.msra.mxu0 %v158
  %1075 = vmatpush.bf16.msra.mxu0 %v154
  %1076 = vmatmul.bf16.gmra.mxu0 %v1039
  %v1077 = vpop.f32.mrf.mxu0
  %v1078 = vadd.f32 0.0, %v1077
  %v1079 = vpop.f32.mrf.mxu0
  %v1080 = vadd.f32 0.0, %v1079
  %1081 = vdwg.mxu0
  %1082 = vmatpush.bf16.msra.mxu0 %v183
  %1083 = vmatpush.bf16.msra.mxu0 %v179
  %1084 = vmatpush.bf16.msra.mxu0 %v175
  %1085 = vmatpush.bf16.msra.mxu0 %v171
  %1086 = vmatpush.bf16.msra.mxu0 %v167
  %1087 = vmatpush.bf16.msra.mxu0 %v163
  %1088 = vmatpush.bf16.msra.mxu0 %v159
  %1089 = vmatpush.bf16.msra.mxu0 %v155
  %1090 = vmatmul.bf16.gmra.mxu0 %v1039
  %v1091 = vpop.f32.mrf.mxu0
  %v1092 = vadd.f32 0.0, %v1091
  %v1093 = vpop.f32.mrf.mxu0
  %v1094 = vadd.f32 0.0, %v1093
  %1095 = vdwg.mxu0
  %v1096 = vadd.f32 %v1031, %v1050
  %v1097 = vadd.f32 %v1032, %v1064
  %v1098 = vadd.f32 %v1033, %v1078
  %v1099 = vadd.f32 %v1034, %v1092
  %v1100 = vadd.f32 %v1035, %v1052
  %v1101 = vadd.f32 %v1036, %v1066
  %v1102 = vadd.f32 %v1037, %v1080
  %v1103 = vadd.f32 %v1038, %v1094
  %v1104 = vxor.u32 %v1096, 2147483648
  %v1105 = vxor.u32 %v1100, 2147483648
  %v1106 = vmul.f32 %v1104, 1.442695
  %v1107 = vpow.pop %v1106
  %v1108 = vmul.f32 %v1105, 1.442695
  %v1109 = vpow.pop %v1108
  %v1110 = vadd.f32 %v1107, 1.0
  %v1111 = vadd.f32 %v1109, 1.0
  %v1112 = vrcp.pop %v1110
  %v1113 = vmul.f32 %v1110, %v1112
  %v1114 = vsub.f32 1.0, %v1113
  %v1115 = vmul.f32 %v1112, %v1114
  %v1116 = vadd.f32 %v1112, %v1115
  %vm1117 = vweird.f32 %v1110
  %vm1118 = vweird.f32 %v1112
  %vm1119 = vmor %vm1117, %vm1118
  %v1120 = vsel %vm1119, %v1112, %v1116
  %v1121 = vand.u32 2147483647, %v1110
  %vm1122 = vcmp.eq.f32.partialorder %v1121, 8.507059e+37
  %v1123 = vand.u32 %v1110, 2147483648
  %v1124 = vor.u32 1.1754944e-38, %v1123
  %v1125 = vsel %vm1122, %v1124, %v1120
  %v1126 = vmul.f32 1.0, %v1125
  %v1127 = vrcp.pop %v1111
  %v1128 = vmul.f32 %v1111, %v1127
  %v1129 = vsub.f32 1.0, %v1128
  %v1130 = vmul.f32 %v1127, %v1129
  %v1131 = vadd.f32 %v1127, %v1130
  %vm1132 = vweird.f32 %v1111
  %vm1133 = vweird.f32 %v1127
  %vm1134 = vmor %vm1132, %vm1133
  %v1135 = vsel %vm1134, %v1127, %v1131
  %v1136 = vand.u32 2147483647, %v1111
  %vm1137 = vcmp.eq.f32.partialorder %v1136, 8.507059e+37
  %v1138 = vand.u32 %v1111, 2147483648
  %v1139 = vor.u32 1.1754944e-38, %v1138
  %v1140 = vsel %vm1137, %v1139, %v1135
  %v1141 = vmul.f32 1.0, %v1140
  %v1142 = vxor.u32 %v1097, 2147483648
  %v1143 = vxor.u32 %v1101, 2147483648
  %v1144 = vmul.f32 %v1142, 1.442695
  %v1145 = vpow.pop %v1144
  %v1146 = vmul.f32 %v1143, 1.442695
  %v1147 = vpow.pop %v1146
  %v1148 = vadd.f32 %v1145, 1.0
  %v1149 = vadd.f32 %v1147, 1.0
  %v1150 = vrcp.pop %v1148
  %v1151 = vmul.f32 %v1148, %v1150
  %v1152 = vsub.f32 1.0, %v1151
  %v1153 = vmul.f32 %v1150, %v1152
  %v1154 = vadd.f32 %v1150, %v1153
  %vm1155 = vweird.f32 %v1148
  %vm1156 = vweird.f32 %v1150
  %vm1157 = vmor %vm1155, %vm1156
  %v1158 = vsel %vm1157, %v1150, %v1154
  %v1159 = vand.u32 2147483647, %v1148
  %vm1160 = vcmp.eq.f32.partialorder %v1159, 8.507059e+37
  %v1161 = vand.u32 %v1148, 2147483648
  %v1162 = vor.u32 1.1754944e-38, %v1161
  %v1163 = vsel %vm1160, %v1162, %v1158
  %v1164 = vmul.f32 1.0, %v1163
  %v1165 = vrcp.pop %v1149
  %v1166 = vmul.f32 %v1149, %v1165
  %v1167 = vsub.f32 1.0, %v1166
  %v1168 = vmul.f32 %v1165, %v1167
  %v1169 = vadd.f32 %v1165, %v1168
  %vm1170 = vweird.f32 %v1149
  %vm1171 = vweird.f32 %v1165
  %vm1172 = vmor %vm1170, %vm1171
  %v1173 = vsel %vm1172, %v1165, %v1169
  %v1174 = vand.u32 2147483647, %v1149
  %vm1175 = vcmp.eq.f32.partialorder %v1174, 8.507059e+37
  %v1176 = vand.u32 %v1149, 2147483648
  %v1177 = vor.u32 1.1754944e-38, %v1176
  %v1178 = vsel %vm1175, %v1177, %v1173
  %v1179 = vmul.f32 1.0, %v1178
  %v1180 = vtanh.pop %v1098
  %v1181 = vtanh.pop %v1102
  %v1182 = vxor.u32 %v1099, 2147483648
  %v1183 = vxor.u32 %v1103, 2147483648
  %v1184 = vmul.f32 %v1182, 1.442695
  %v1185 = vpow.pop %v1184
  %v1186 = vmul.f32 %v1183, 1.442695
  %v1187 = vpow.pop %v1186
  %v1188 = vadd.f32 %v1185, 1.0
  %v1189 = vadd.f32 %v1187, 1.0
  %v1190 = vrcp.pop %v1188
  %v1191 = vmul.f32 %v1188, %v1190
  %v1192 = vsub.f32 1.0, %v1191
  %v1193 = vmul.f32 %v1190, %v1192
  %v1194 = vadd.f32 %v1190, %v1193
  %vm1195 = vweird.f32 %v1188
  %vm1196 = vweird.f32 %v1190
  %vm1197 = vmor %vm1195, %vm1196
  %v1198 = vsel %vm1197, %v1190, %v1194
  %v1199 = vand.u32 2147483647, %v1188
  %vm1200 = vcmp.eq.f32.partialorder %v1199, 8.507059e+37
  %v1201 = vand.u32 %v1188, 2147483648
  %v1202 = vor.u32 1.1754944e-38, %v1201
  %v1203 = vsel %vm1200, %v1202, %v1198
  %v1204 = vmul.f32 1.0, %v1203
  %v1205 = vrcp.pop %v1189
  %v1206 = vmul.f32 %v1189, %v1205
  %v1207 = vsub.f32 1.0, %v1206
  %v1208 = vmul.f32 %v1205, %v1207
  %v1209 = vadd.f32 %v1205, %v1208
  %vm1210 = vweird.f32 %v1189
  %vm1211 = vweird.f32 %v1205
  %vm1212 = vmor %vm1210, %vm1211
  %v1213 = vsel %vm1212, %v1205, %v1209
  %v1214 = vand.u32 2147483647, %v1189
  %vm1215 = vcmp.eq.f32.partialorder %v1214, 8.507059e+37
  %v1216 = vand.u32 %v1189, 2147483648
  %v1217 = vor.u32 1.1754944e-38, %v1216
  %v1218 = vsel %vm1215, %v1217, %v1213
  %v1219 = vmul.f32 1.0, %v1218
  %v1220 = vmul.f32 %v1164, %v1018
  %v1221 = vmul.f32 %v1179, %v1019
  %v1222 = vmul.f32 %v1126, %v1180
  %v1223 = vmul.f32 %v1141, %v1181
  %v1224 = vadd.f32 %v1220, %v1222
  %v1225 = vadd.f32 %v1221, %v1223
  %v1226 = vtanh.pop %v1224
  %v1227 = vtanh.pop %v1225
  %v1228 = vmul.f32 %v1204, %v1226
  %v1229 = vmul.f32 %v1219, %v1227
  %v1230 = vadd.f32 %v1024, %v1228
  %v1231 = vadd.f32 %v1025, %v1229
  %s1232 = scalar_lea.vmem %s0, 160
  %v1233 = vld [vmem:[%s1232] sm:$0xff]
  %v1234 = vld [vmem:[%s1232 + $0x8] sm:$0xff]
  %v1235 = vld [vmem:[%s1232 + $0x10] sm:$0xff]
  %v1236 = vld [vmem:[%s1232 + $0x18] sm:$0xff]
  %v1237 = vunpack.c.l.bf16 %v1233
  %v1238 = vunpack.c.h.bf16 %v1233
  %v1239 = vunpack.c.l.bf16 %v1234
  %v1240 = vunpack.c.h.bf16 %v1234
  %v1241 = vunpack.c.l.bf16 %v1235
  %v1242 = vunpack.c.h.bf16 %v1235
  %v1243 = vunpack.c.l.bf16 %v1236
  %v1244 = vunpack.c.h.bf16 %v1236
  %v1245 = vpack.c.bf16 %v1229, %v1228
  %1246 = vmatpush.bf16.msra.mxu0 %v180
  %1247 = vmatpush.bf16.msra.mxu0 %v176
  %1248 = vmatpush.bf16.msra.mxu0 %v172
  %1249 = vmatpush.bf16.msra.mxu0 %v168
  %1250 = vmatpush.bf16.msra.mxu0 %v164
  %1251 = vmatpush.bf16.msra.mxu0 %v160
  %1252 = vmatpush.bf16.msra.mxu0 %v156
  %1253 = vmatpush.bf16.msra.mxu0 %v152
  %1254 = vmatmul.bf16.gmra.mxu0 %v1245
  %v1255 = vpop.f32.mrf.mxu0
  %v1256 = vadd.f32 0.0, %v1255
  %v1257 = vpop.f32.mrf.mxu0
  %v1258 = vadd.f32 0.0, %v1257
  %1259 = vdwg.mxu0
  %1260 = vmatpush.bf16.msra.mxu0 %v181
  %1261 = vmatpush.bf16.msra.mxu0 %v177
  %1262 = vmatpush.bf16.msra.mxu0 %v173
  %1263 = vmatpush.bf16.msra.mxu0 %v169
  %1264 = vmatpush.bf16.msra.mxu0 %v165
  %1265 = vmatpush.bf16.msra.mxu0 %v161
  %1266 = vmatpush.bf16.msra.mxu0 %v157
  %1267 = vmatpush.bf16.msra.mxu0 %v153
  %1268 = vmatmul.bf16.gmra.mxu0 %v1245
  %v1269 = vpop.f32.mrf.mxu0
  %v1270 = vadd.f32 0.0, %v1269
  %v1271 = vpop.f32.mrf.mxu0
  %v1272 = vadd.f32 0.0, %v1271
  %1273 = vdwg.mxu0
  %1274 = vmatpush.bf16.msra.mxu0 %v182
  %1275 = vmatpush.bf16.msra.mxu0 %v178
  %1276 = vmatpush.bf16.msra.mxu0 %v174
  %1277 = vmatpush.bf16.msra.mxu0 %v170
  %1278 = vmatpush.bf16.msra.mxu0 %v166
  %1279 = vmatpush.bf16.msra.mxu0 %v162
  %1280 = vmatpush.bf16.msra.mxu0 %v158
  %1281 = vmatpush.bf16.msra.mxu0 %v154
  %1282 = vmatmul.bf16.gmra.mxu0 %v1245
  %v1283 = vpop.f32.mrf.mxu0
  %v1284 = vadd.f32 0.0, %v1283
  %v1285 = vpop.f32.mrf.mxu0
  %v1286 = vadd.f32 0.0, %v1285
  %1287 = vdwg.mxu0
  %1288 = vmatpush.bf16.msra.mxu0 %v183
  %1289 = vmatpush.bf16.msra.mxu0 %v179
  %1290 = vmatpush.bf16.msra.mxu0 %v175
  %1291 = vmatpush.bf16.msra.mxu0 %v171
  %1292 = vmatpush.bf16.msra.mxu0 %v167
  %1293 = vmatpush.bf16.msra.mxu0 %v163
  %1294 = vmatpush.bf16.msra.mxu0 %v159
  %1295 = vmatpush.bf16.msra.mxu0 %v155
  %1296 = vmatmul.bf16.gmra.mxu0 %v1245
  %v1297 = vpop.f32.mrf.mxu0
  %v1298 = vadd.f32 0.0, %v1297
  %v1299 = vpop.f32.mrf.mxu0
  %v1300 = vadd.f32 0.0, %v1299
  %1301 = vdwg.mxu0
  %v1302 = vadd.f32 %v1237, %v1256
  %v1303 = vadd.f32 %v1238, %v1270
  %v1304 = vadd.f32 %v1239, %v1284
  %v1305 = vadd.f32 %v1240, %v1298
  %v1306 = vadd.f32 %v1241, %v1258
  %v1307 = vadd.f32 %v1242, %v1272
  %v1308 = vadd.f32 %v1243, %v1286
  %v1309 = vadd.f32 %v1244, %v1300
  %v1310 = vxor.u32 %v1302, 2147483648
  %v1311 = vxor.u32 %v1306, 2147483648
  %v1312 = vmul.f32 %v1310, 1.442695
  %v1313 = vpow.pop %v1312
  %v1314 = vmul.f32 %v1311, 1.442695
  %v1315 = vpow.pop %v1314
  %v1316 = vadd.f32 %v1313, 1.0
  %v1317 = vadd.f32 %v1315, 1.0
  %v1318 = vrcp.pop %v1316
  %v1319 = vmul.f32 %v1316, %v1318
  %v1320 = vsub.f32 1.0, %v1319
  %v1321 = vmul.f32 %v1318, %v1320
  %v1322 = vadd.f32 %v1318, %v1321
  %vm1323 = vweird.f32 %v1316
  %vm1324 = vweird.f32 %v1318
  %vm1325 = vmor %vm1323, %vm1324
  %v1326 = vsel %vm1325, %v1318, %v1322
  %v1327 = vand.u32 2147483647, %v1316
  %vm1328 = vcmp.eq.f32.partialorder %v1327, 8.507059e+37
  %v1329 = vand.u32 %v1316, 2147483648
  %v1330 = vor.u32 1.1754944e-38, %v1329
  %v1331 = vsel %vm1328, %v1330, %v1326
  %v1332 = vmul.f32 1.0, %v1331
  %v1333 = vrcp.pop %v1317
  %v1334 = vmul.f32 %v1317, %v1333
  %v1335 = vsub.f32 1.0, %v1334
  %v1336 = vmul.f32 %v1333, %v1335
  %v1337 = vadd.f32 %v1333, %v1336
  %vm1338 = vweird.f32 %v1317
  %vm1339 = vweird.f32 %v1333
  %vm1340 = vmor %vm1338, %vm1339
  %v1341 = vsel %vm1340, %v1333, %v1337
  %v1342 = vand.u32 2147483647, %v1317
  %vm1343 = vcmp.eq.f32.partialorder %v1342, 8.507059e+37
  %v1344 = vand.u32 %v1317, 2147483648
  %v1345 = vor.u32 1.1754944e-38, %v1344
  %v1346 = vsel %vm1343, %v1345, %v1341
  %v1347 = vmul.f32 1.0, %v1346
  %v1348 = vxor.u32 %v1303, 2147483648
  %v1349 = vxor.u32 %v1307, 2147483648
  %v1350 = vmul.f32 %v1348, 1.442695
  %v1351 = vpow.pop %v1350
  %v1352 = vmul.f32 %v1349, 1.442695
  %v1353 = vpow.pop %v1352
  %v1354 = vadd.f32 %v1351, 1.0
  %v1355 = vadd.f32 %v1353, 1.0
  %v1356 = vrcp.pop %v1354
  %v1357 = vmul.f32 %v1354, %v1356
  %v1358 = vsub.f32 1.0, %v1357
  %v1359 = vmul.f32 %v1356, %v1358
  %v1360 = vadd.f32 %v1356, %v1359
  %vm1361 = vweird.f32 %v1354
  %vm1362 = vweird.f32 %v1356
  %vm1363 = vmor %vm1361, %vm1362
  %v1364 = vsel %vm1363, %v1356, %v1360
  %v1365 = vand.u32 2147483647, %v1354
  %vm1366 = vcmp.eq.f32.partialorder %v1365, 8.507059e+37
  %v1367 = vand.u32 %v1354, 2147483648
  %v1368 = vor.u32 1.1754944e-38, %v1367
  %v1369 = vsel %vm1366, %v1368, %v1364
  %v1370 = vmul.f32 1.0, %v1369
  %v1371 = vrcp.pop %v1355
  %v1372 = vmul.f32 %v1355, %v1371
  %v1373 = vsub.f32 1.0, %v1372
  %v1374 = vmul.f32 %v1371, %v1373
  %v1375 = vadd.f32 %v1371, %v1374
  %vm1376 = vweird.f32 %v1355
  %vm1377 = vweird.f32 %v1371
  %vm1378 = vmor %vm1376, %vm1377
  %v1379 = vsel %vm1378, %v1371, %v1375
  %v1380 = vand.u32 2147483647, %v1355
  %vm1381 = vcmp.eq.f32.partialorder %v1380, 8.507059e+37
  %v1382 = vand.u32 %v1355, 2147483648
  %v1383 = vor.u32 1.1754944e-38, %v1382
  %v1384 = vsel %vm1381, %v1383, %v1379
  %v1385 = vmul.f32 1.0, %v1384
  %v1386 = vtanh.pop %v1304
  %v1387 = vtanh.pop %v1308
  %v1388 = vxor.u32 %v1305, 2147483648
  %v1389 = vxor.u32 %v1309, 2147483648
  %v1390 = vmul.f32 %v1388, 1.442695
  %v1391 = vpow.pop %v1390
  %v1392 = vmul.f32 %v1389, 1.442695
  %v1393 = vpow.pop %v1392
  %v1394 = vadd.f32 %v1391, 1.0
  %v1395 = vadd.f32 %v1393, 1.0
  %v1396 = vrcp.pop %v1394
  %v1397 = vmul.f32 %v1394, %v1396
  %v1398 = vsub.f32 1.0, %v1397
  %v1399 = vmul.f32 %v1396, %v1398
  %v1400 = vadd.f32 %v1396, %v1399
  %vm1401 = vweird.f32 %v1394
  %vm1402 = vweird.f32 %v1396
  %vm1403 = vmor %vm1401, %vm1402
  %v1404 = vsel %vm1403, %v1396, %v1400
  %v1405 = vand.u32 2147483647, %v1394
  %vm1406 = vcmp.eq.f32.partialorder %v1405, 8.507059e+37
  %v1407 = vand.u32 %v1394, 2147483648
  %v1408 = vor.u32 1.1754944e-38, %v1407
  %v1409 = vsel %vm1406, %v1408, %v1404
  %v1410 = vmul.f32 1.0, %v1409
  %v1411 = vrcp.pop %v1395
  %v1412 = vmul.f32 %v1395, %v1411
  %v1413 = vsub.f32 1.0, %v1412
  %v1414 = vmul.f32 %v1411, %v1413
  %v1415 = vadd.f32 %v1411, %v1414
  %vm1416 = vweird.f32 %v1395
  %vm1417 = vweird.f32 %v1411
  %vm1418 = vmor %vm1416, %vm1417
  %v1419 = vsel %vm1418, %v1411, %v1415
  %v1420 = vand.u32 2147483647, %v1395
  %vm1421 = vcmp.eq.f32.partialorder %v1420, 8.507059e+37
  %v1422 = vand.u32 %v1395, 2147483648
  %v1423 = vor.u32 1.1754944e-38, %v1422
  %v1424 = vsel %vm1421, %v1423, %v1419
  %v1425 = vmul.f32 1.0, %v1424
  %v1426 = vmul.f32 %v1370, %v1224
  %v1427 = vmul.f32 %v1385, %v1225
  %v1428 = vmul.f32 %v1332, %v1386
  %v1429 = vmul.f32 %v1347, %v1387
  %v1430 = vadd.f32 %v1426, %v1428
  %v1431 = vadd.f32 %v1427, %v1429
  %v1432 = vtanh.pop %v1430
  %v1433 = vtanh.pop %v1431
  %v1434 = vmul.f32 %v1410, %v1432
  %v1435 = vmul.f32 %v1425, %v1433
  %v1436 = vadd.f32 %v1230, %v1434
  %v1437 = vadd.f32 %v1231, %v1435
  %s1438 = scalar_lea.vmem %s0, 192
  %v1439 = vld [vmem:[%s1438] sm:$0xff]
  %v1440 = vld [vmem:[%s1438 + $0x8] sm:$0xff]
  %v1441 = vld [vmem:[%s1438 + $0x10] sm:$0xff]
  %v1442 = vld [vmem:[%s1438 + $0x18] sm:$0xff]
  %v1443 = vunpack.c.l.bf16 %v1439
  %v1444 = vunpack.c.h.bf16 %v1439
  %v1445 = vunpack.c.l.bf16 %v1440
  %v1446 = vunpack.c.h.bf16 %v1440
  %v1447 = vunpack.c.l.bf16 %v1441
  %v1448 = vunpack.c.h.bf16 %v1441
  %v1449 = vunpack.c.l.bf16 %v1442
  %v1450 = vunpack.c.h.bf16 %v1442
  %v1451 = vpack.c.bf16 %v1435, %v1434
  %1452 = vmatpush.bf16.msra.mxu0 %v180
  %1453 = vmatpush.bf16.msra.mxu0 %v176
  %1454 = vmatpush.bf16.msra.mxu0 %v172
  %1455 = vmatpush.bf16.msra.mxu0 %v168
  %1456 = vmatpush.bf16.msra.mxu0 %v164
  %1457 = vmatpush.bf16.msra.mxu0 %v160
  %1458 = vmatpush.bf16.msra.mxu0 %v156
  %1459 = vmatpush.bf16.msra.mxu0 %v152
  %1460 = vmatmul.bf16.gmra.mxu0 %v1451
  %v1461 = vpop.f32.mrf.mxu0
  %v1462 = vadd.f32 0.0, %v1461
  %v1463 = vpop.f32.mrf.mxu0
  %v1464 = vadd.f32 0.0, %v1463
  %1465 = vdwg.mxu0
  %1466 = vmatpush.bf16.msra.mxu0 %v181
  %1467 = vmatpush.bf16.msra.mxu0 %v177
  %1468 = vmatpush.bf16.msra.mxu0 %v173
  %1469 = vmatpush.bf16.msra.mxu0 %v169
  %1470 = vmatpush.bf16.msra.mxu0 %v165
  %1471 = vmatpush.bf16.msra.mxu0 %v161
  %1472 = vmatpush.bf16.msra.mxu0 %v157
  %1473 = vmatpush.bf16.msra.mxu0 %v153
  %1474 = vmatmul.bf16.gmra.mxu0 %v1451
  %v1475 = vpop.f32.mrf.mxu0
  %v1476 = vadd.f32 0.0, %v1475
  %v1477 = vpop.f32.mrf.mxu0
  %v1478 = vadd.f32 0.0, %v1477
  %1479 = vdwg.mxu0
  %1480 = vmatpush.bf16.msra.mxu0 %v182
  %1481 = vmatpush.bf16.msra.mxu0 %v178
  %1482 = vmatpush.bf16.msra.mxu0 %v174
  %1483 = vmatpush.bf16.msra.mxu0 %v170
  %1484 = vmatpush.bf16.msra.mxu0 %v166
  %1485 = vmatpush.bf16.msra.mxu0 %v162
  %1486 = vmatpush.bf16.msra.mxu0 %v158
  %1487 = vmatpush.bf16.msra.mxu0 %v154
  %1488 = vmatmul.bf16.gmra.mxu0 %v1451
  %v1489 = vpop.f32.mrf.mxu0
  %v1490 = vadd.f32 0.0, %v1489
  %v1491 = vpop.f32.mrf.mxu0
  %v1492 = vadd.f32 0.0, %v1491
  %1493 = vdwg.mxu0
  %1494 = vmatpush.bf16.msra.mxu0 %v183
  %1495 = vmatpush.bf16.msra.mxu0 %v179
  %1496 = vmatpush.bf16.msra.mxu0 %v175
  %1497 = vmatpush.bf16.msra.mxu0 %v171
  %1498 = vmatpush.bf16.msra.mxu0 %v167
  %1499 = vmatpush.bf16.msra.mxu0 %v163
  %1500 = vmatpush.bf16.msra.mxu0 %v159
  %1501 = vmatpush.bf16.msra.mxu0 %v155
  %1502 = vmatmul.bf16.gmra.mxu0 %v1451
  %v1503 = vpop.f32.mrf.mxu0
  %v1504 = vadd.f32 0.0, %v1503
  %v1505 = vpop.f32.mrf.mxu0
  %v1506 = vadd.f32 0.0, %v1505
  %1507 = vdwg.mxu0
  %v1508 = vadd.f32 %v1443, %v1462
  %v1509 = vadd.f32 %v1444, %v1476
  %v1510 = vadd.f32 %v1445, %v1490
  %v1511 = vadd.f32 %v1446, %v1504
  %v1512 = vadd.f32 %v1447, %v1464
  %v1513 = vadd.f32 %v1448, %v1478
  %v1514 = vadd.f32 %v1449, %v1492
  %v1515 = vadd.f32 %v1450, %v1506
  %v1516 = vxor.u32 %v1508, 2147483648
  %v1517 = vxor.u32 %v1512, 2147483648
  %v1518 = vmul.f32 %v1516, 1.442695
  %v1519 = vpow.pop %v1518
  %v1520 = vmul.f32 %v1517, 1.442695
  %v1521 = vpow.pop %v1520
  %v1522 = vadd.f32 %v1519, 1.0
  %v1523 = vadd.f32 %v1521, 1.0
  %v1524 = vrcp.pop %v1522
  %v1525 = vmul.f32 %v1522, %v1524
  %v1526 = vsub.f32 1.0, %v1525
  %v1527 = vmul.f32 %v1524, %v1526
  %v1528 = vadd.f32 %v1524, %v1527
  %vm1529 = vweird.f32 %v1522
  %vm1530 = vweird.f32 %v1524
  %vm1531 = vmor %vm1529, %vm1530
  %v1532 = vsel %vm1531, %v1524, %v1528
  %v1533 = vand.u32 2147483647, %v1522
  %vm1534 = vcmp.eq.f32.partialorder %v1533, 8.507059e+37
  %v1535 = vand.u32 %v1522, 2147483648
  %v1536 = vor.u32 1.1754944e-38, %v1535
  %v1537 = vsel %vm1534, %v1536, %v1532
  %v1538 = vmul.f32 1.0, %v1537
  %v1539 = vrcp.pop %v1523
  %v1540 = vmul.f32 %v1523, %v1539
  %v1541 = vsub.f32 1.0, %v1540
  %v1542 = vmul.f32 %v1539, %v1541
  %v1543 = vadd.f32 %v1539, %v1542
  %vm1544 = vweird.f32 %v1523
  %vm1545 = vweird.f32 %v1539
  %vm1546 = vmor %vm1544, %vm1545
  %v1547 = vsel %vm1546, %v1539, %v1543
  %v1548 = vand.u32 2147483647, %v1523
  %vm1549 = vcmp.eq.f32.partialorder %v1548, 8.507059e+37
  %v1550 = vand.u32 %v1523, 2147483648
  %v1551 = vor.u32 1.1754944e-38, %v1550
  %v1552 = vsel %vm1549, %v1551, %v1547
  %v1553 = vmul.f32 1.0, %v1552
  %v1554 = vxor.u32 %v1509, 2147483648
  %v1555 = vxor.u32 %v1513, 2147483648
  %v1556 = vmul.f32 %v1554, 1.442695
  %v1557 = vpow.pop %v1556
  %v1558 = vmul.f32 %v1555, 1.442695
  %v1559 = vpow.pop %v1558
  %v1560 = vadd.f32 %v1557, 1.0
  %v1561 = vadd.f32 %v1559, 1.0
  %v1562 = vrcp.pop %v1560
  %v1563 = vmul.f32 %v1560, %v1562
  %v1564 = vsub.f32 1.0, %v1563
  %v1565 = vmul.f32 %v1562, %v1564
  %v1566 = vadd.f32 %v1562, %v1565
  %vm1567 = vweird.f32 %v1560
  %vm1568 = vweird.f32 %v1562
  %vm1569 = vmor %vm1567, %vm1568
  %v1570 = vsel %vm1569, %v1562, %v1566
  %v1571 = vand.u32 2147483647, %v1560
  %vm1572 = vcmp.eq.f32.partialorder %v1571, 8.507059e+37
  %v1573 = vand.u32 %v1560, 2147483648
  %v1574 = vor.u32 1.1754944e-38, %v1573
  %v1575 = vsel %vm1572, %v1574, %v1570
  %v1576 = vmul.f32 1.0, %v1575
  %v1577 = vrcp.pop %v1561
  %v1578 = vmul.f32 %v1561, %v1577
  %v1579 = vsub.f32 1.0, %v1578
  %v1580 = vmul.f32 %v1577, %v1579
  %v1581 = vadd.f32 %v1577, %v1580
  %vm1582 = vweird.f32 %v1561
  %vm1583 = vweird.f32 %v1577
  %vm1584 = vmor %vm1582, %vm1583
  %v1585 = vsel %vm1584, %v1577, %v1581
  %v1586 = vand.u32 2147483647, %v1561
  %vm1587 = vcmp.eq.f32.partialorder %v1586, 8.507059e+37
  %v1588 = vand.u32 %v1561, 2147483648
  %v1589 = vor.u32 1.1754944e-38, %v1588
  %v1590 = vsel %vm1587, %v1589, %v1585
  %v1591 = vmul.f32 1.0, %v1590
  %v1592 = vtanh.pop %v1510
  %v1593 = vtanh.pop %v1514
  %v1594 = vxor.u32 %v1511, 2147483648
  %v1595 = vxor.u32 %v1515, 2147483648
  %v1596 = vmul.f32 %v1594, 1.442695
  %v1597 = vpow.pop %v1596
  %v1598 = vmul.f32 %v1595, 1.442695
  %v1599 = vpow.pop %v1598
  %v1600 = vadd.f32 %v1597, 1.0
  %v1601 = vadd.f32 %v1599, 1.0
  %v1602 = vrcp.pop %v1600
  %v1603 = vmul.f32 %v1600, %v1602
  %v1604 = vsub.f32 1.0, %v1603
  %v1605 = vmul.f32 %v1602, %v1604
  %v1606 = vadd.f32 %v1602, %v1605
  %vm1607 = vweird.f32 %v1600
  %vm1608 = vweird.f32 %v1602
  %vm1609 = vmor %vm1607, %vm1608
  %v1610 = vsel %vm1609, %v1602, %v1606
  %v1611 = vand.u32 2147483647, %v1600
  %vm1612 = vcmp.eq.f32.partialorder %v1611, 8.507059e+37
  %v1613 = vand.u32 %v1600, 2147483648
  %v1614 = vor.u32 1.1754944e-38, %v1613
  %v1615 = vsel %vm1612, %v1614, %v1610
  %v1616 = vmul.f32 1.0, %v1615
  %v1617 = vrcp.pop %v1601
  %v1618 = vmul.f32 %v1601, %v1617
  %v1619 = vsub.f32 1.0, %v1618
  %v1620 = vmul.f32 %v1617, %v1619
  %v1621 = vadd.f32 %v1617, %v1620
  %vm1622 = vweird.f32 %v1601
  %vm1623 = vweird.f32 %v1617
  %vm1624 = vmor %vm1622, %vm1623
  %v1625 = vsel %vm1624, %v1617, %v1621
  %v1626 = vand.u32 2147483647, %v1601
  %vm1627 = vcmp.eq.f32.partialorder %v1626, 8.507059e+37
  %v1628 = vand.u32 %v1601, 2147483648
  %v1629 = vor.u32 1.1754944e-38, %v1628
  %v1630 = vsel %vm1627, %v1629, %v1625
  %v1631 = vmul.f32 1.0, %v1630
  %v1632 = vmul.f32 %v1576, %v1430
  %v1633 = vmul.f32 %v1591, %v1431
  %v1634 = vmul.f32 %v1538, %v1592
  %v1635 = vmul.f32 %v1553, %v1593
  %v1636 = vadd.f32 %v1632, %v1634
  %v1637 = vadd.f32 %v1633, %v1635
  %v1638 = vtanh.pop %v1636
  %v1639 = vtanh.pop %v1637
  %v1640 = vmul.f32 %v1616, %v1638
  %v1641 = vmul.f32 %v1631, %v1639
  %v1642 = vadd.f32 %v1436, %v1640
  %v1643 = vadd.f32 %v1437, %v1641
  %s1644 = scalar_lea.vmem %s0, 224
  %v1645 = vld [vmem:[%s1644] sm:$0xff]
  %v1646 = vld [vmem:[%s1644 + $0x8] sm:$0xff]
  %v1647 = vld [vmem:[%s1644 + $0x10] sm:$0xff]
  %v1648 = vld [vmem:[%s1644 + $0x18] sm:$0xff]
  %v1649 = vunpack.c.l.bf16 %v1645
  %v1650 = vunpack.c.h.bf16 %v1645
  %v1651 = vunpack.c.l.bf16 %v1646
  %v1652 = vunpack.c.h.bf16 %v1646
  %v1653 = vunpack.c.l.bf16 %v1647
  %v1654 = vunpack.c.h.bf16 %v1647
  %v1655 = vunpack.c.l.bf16 %v1648
  %v1656 = vunpack.c.h.bf16 %v1648
  %v1657 = vpack.c.bf16 %v1641, %v1640
  %1658 = vmatpush.bf16.msra.mxu0 %v180
  %1659 = vmatpush.bf16.msra.mxu0 %v176
  %1660 = vmatpush.bf16.msra.mxu0 %v172
  %1661 = vmatpush.bf16.msra.mxu0 %v168
  %1662 = vmatpush.bf16.msra.mxu0 %v164
  %1663 = vmatpush.bf16.msra.mxu0 %v160
  %1664 = vmatpush.bf16.msra.mxu0 %v156
  %1665 = vmatpush.bf16.msra.mxu0 %v152
  %1666 = vmatmul.bf16.gmra.mxu0 %v1657
  %v1667 = vpop.f32.mrf.mxu0
  %v1668 = vadd.f32 0.0, %v1667
  %v1669 = vpop.f32.mrf.mxu0
  %v1670 = vadd.f32 0.0, %v1669
  %1671 = vdwg.mxu0
  %1672 = vmatpush.bf16.msra.mxu0 %v181
  %1673 = vmatpush.bf16.msra.mxu0 %v177
  %1674 = vmatpush.bf16.msra.mxu0 %v173
  %1675 = vmatpush.bf16.msra.mxu0 %v169
  %1676 = vmatpush.bf16.msra.mxu0 %v165
  %1677 = vmatpush.bf16.msra.mxu0 %v161
  %1678 = vmatpush.bf16.msra.mxu0 %v157
  %1679 = vmatpush.bf16.msra.mxu0 %v153
  %1680 = vmatmul.bf16.gmra.mxu0 %v1657
  %v1681 = vpop.f32.mrf.mxu0
  %v1682 = vadd.f32 0.0, %v1681
  %v1683 = vpop.f32.mrf.mxu0
  %v1684 = vadd.f32 0.0, %v1683
  %1685 = vdwg.mxu0
  %1686 = vmatpush.bf16.msra.mxu0 %v182
  %1687 = vmatpush.bf16.msra.mxu0 %v178
  %1688 = vmatpush.bf16.msra.mxu0 %v174
  %1689 = vmatpush.bf16.msra.mxu0 %v170
  %1690 = vmatpush.bf16.msra.mxu0 %v166
  %1691 = vmatpush.bf16.msra.mxu0 %v162
  %1692 = vmatpush.bf16.msra.mxu0 %v158
  %1693 = vmatpush.bf16.msra.mxu0 %v154
  %1694 = vmatmul.bf16.gmra.mxu0 %v1657
  %v1695 = vpop.f32.mrf.mxu0
  %v1696 = vadd.f32 0.0, %v1695
  %v1697 = vpop.f32.mrf.mxu0
  %v1698 = vadd.f32 0.0, %v1697
  %1699 = vdwg.mxu0
  %1700 = vmatpush.bf16.msra.mxu0 %v183
  %1701 = vmatpush.bf16.msra.mxu0 %v179
  %1702 = vmatpush.bf16.msra.mxu0 %v175
  %1703 = vmatpush.bf16.msra.mxu0 %v171
  %1704 = vmatpush.bf16.msra.mxu0 %v167
  %1705 = vmatpush.bf16.msra.mxu0 %v163
  %1706 = vmatpush.bf16.msra.mxu0 %v159
  %1707 = vmatpush.bf16.msra.mxu0 %v155
  %1708 = vmatmul.bf16.gmra.mxu0 %v1657
  %v1709 = vpop.f32.mrf.mxu0
  %v1710 = vadd.f32 0.0, %v1709
  %v1711 = vpop.f32.mrf.mxu0
  %v1712 = vadd.f32 0.0, %v1711
  %1713 = vdwg.mxu0
  %v1714 = vadd.f32 %v1649, %v1668
  %v1715 = vadd.f32 %v1650, %v1682
  %v1716 = vadd.f32 %v1651, %v1696
  %v1717 = vadd.f32 %v1652, %v1710
  %v1718 = vadd.f32 %v1653, %v1670
  %v1719 = vadd.f32 %v1654, %v1684
  %v1720 = vadd.f32 %v1655, %v1698
  %v1721 = vadd.f32 %v1656, %v1712
  %v1722 = vxor.u32 %v1714, 2147483648
  %v1723 = vxor.u32 %v1718, 2147483648
  %v1724 = vmul.f32 %v1722, 1.442695
  %v1725 = vpow.pop %v1724
  %v1726 = vmul.f32 %v1723, 1.442695
  %v1727 = vpow.pop %v1726
  %v1728 = vadd.f32 %v1725, 1.0
  %v1729 = vadd.f32 %v1727, 1.0
  %v1730 = vrcp.pop %v1728
  %v1731 = vmul.f32 %v1728, %v1730
  %v1732 = vsub.f32 1.0, %v1731
  %v1733 = vmul.f32 %v1730, %v1732
  %v1734 = vadd.f32 %v1730, %v1733
  %vm1735 = vweird.f32 %v1728
  %vm1736 = vweird.f32 %v1730
  %vm1737 = vmor %vm1735, %vm1736
  %v1738 = vsel %vm1737, %v1730, %v1734
  %v1739 = vand.u32 2147483647, %v1728
  %vm1740 = vcmp.eq.f32.partialorder %v1739, 8.507059e+37
  %v1741 = vand.u32 %v1728, 2147483648
  %v1742 = vor.u32 1.1754944e-38, %v1741
  %v1743 = vsel %vm1740, %v1742, %v1738
  %v1744 = vmul.f32 1.0, %v1743
  %v1745 = vrcp.pop %v1729
  %v1746 = vmul.f32 %v1729, %v1745
  %v1747 = vsub.f32 1.0, %v1746
  %v1748 = vmul.f32 %v1745, %v1747
  %v1749 = vadd.f32 %v1745, %v1748
  %vm1750 = vweird.f32 %v1729
  %vm1751 = vweird.f32 %v1745
  %vm1752 = vmor %vm1750, %vm1751
  %v1753 = vsel %vm1752, %v1745, %v1749
  %v1754 = vand.u32 2147483647, %v1729
  %vm1755 = vcmp.eq.f32.partialorder %v1754, 8.507059e+37
  %v1756 = vand.u32 %v1729, 2147483648
  %v1757 = vor.u32 1.1754944e-38, %v1756
  %v1758 = vsel %vm1755, %v1757, %v1753
  %v1759 = vmul.f32 1.0, %v1758
  %v1760 = vxor.u32 %v1715, 2147483648
  %v1761 = vxor.u32 %v1719, 2147483648
  %v1762 = vmul.f32 %v1760, 1.442695
  %v1763 = vpow.pop %v1762
  %v1764 = vmul.f32 %v1761, 1.442695
  %v1765 = vpow.pop %v1764
  %v1766 = vadd.f32 %v1763, 1.0
  %v1767 = vadd.f32 %v1765, 1.0
  %v1768 = vrcp.pop %v1766
  %v1769 = vmul.f32 %v1766, %v1768
  %v1770 = vsub.f32 1.0, %v1769
  %v1771 = vmul.f32 %v1768, %v1770
  %v1772 = vadd.f32 %v1768, %v1771
  %vm1773 = vweird.f32 %v1766
  %vm1774 = vweird.f32 %v1768
  %vm1775 = vmor %vm1773, %vm1774
  %v1776 = vsel %vm1775, %v1768, %v1772
  %v1777 = vand.u32 2147483647, %v1766
  %vm1778 = vcmp.eq.f32.partialorder %v1777, 8.507059e+37
  %v1779 = vand.u32 %v1766, 2147483648
  %v1780 = vor.u32 1.1754944e-38, %v1779
  %v1781 = vsel %vm1778, %v1780, %v1776
  %v1782 = vmul.f32 1.0, %v1781
  %v1783 = vrcp.pop %v1767
  %v1784 = vmul.f32 %v1767, %v1783
  %v1785 = vsub.f32 1.0, %v1784
  %v1786 = vmul.f32 %v1783, %v1785
  %v1787 = vadd.f32 %v1783, %v1786
  %vm1788 = vweird.f32 %v1767
  %vm1789 = vweird.f32 %v1783
  %vm1790 = vmor %vm1788, %vm1789
  %v1791 = vsel %vm1790, %v1783, %v1787
  %v1792 = vand.u32 2147483647, %v1767
  %vm1793 = vcmp.eq.f32.partialorder %v1792, 8.507059e+37
  %v1794 = vand.u32 %v1767, 2147483648
  %v1795 = vor.u32 1.1754944e-38, %v1794
  %v1796 = vsel %vm1793, %v1795, %v1791
  %v1797 = vmul.f32 1.0, %v1796
  %v1798 = vtanh.pop %v1716
  %v1799 = vtanh.pop %v1720
  %v1800 = vxor.u32 %v1717, 2147483648
  %v1801 = vxor.u32 %v1721, 2147483648
  %v1802 = vmul.f32 %v1800, 1.442695
  %v1803 = vpow.pop %v1802
  %v1804 = vmul.f32 %v1801, 1.442695
  %v1805 = vpow.pop %v1804
  %v1806 = vadd.f32 %v1803, 1.0
  %v1807 = vadd.f32 %v1805, 1.0
  %v1808 = vrcp.pop %v1806
  %v1809 = vmul.f32 %v1806, %v1808
  %v1810 = vsub.f32 1.0, %v1809
  %v1811 = vmul.f32 %v1808, %v1810
  %v1812 = vadd.f32 %v1808, %v1811
  %vm1813 = vweird.f32 %v1806
  %vm1814 = vweird.f32 %v1808
  %vm1815 = vmor %vm1813, %vm1814
  %v1816 = vsel %vm1815, %v1808, %v1812
  %v1817 = vand.u32 2147483647, %v1806
  %vm1818 = vcmp.eq.f32.partialorder %v1817, 8.507059e+37
  %v1819 = vand.u32 %v1806, 2147483648
  %v1820 = vor.u32 1.1754944e-38, %v1819
  %v1821 = vsel %vm1818, %v1820, %v1816
  %v1822 = vmul.f32 1.0, %v1821
  %v1823 = vrcp.pop %v1807
  %v1824 = vmul.f32 %v1807, %v1823
  %v1825 = vsub.f32 1.0, %v1824
  %v1826 = vmul.f32 %v1823, %v1825
  %v1827 = vadd.f32 %v1823, %v1826
  %vm1828 = vweird.f32 %v1807
  %vm1829 = vweird.f32 %v1823
  %vm1830 = vmor %vm1828, %vm1829
  %v1831 = vsel %vm1830, %v1823, %v1827
  %v1832 = vand.u32 2147483647, %v1807
  %vm1833 = vcmp.eq.f32.partialorder %v1832, 8.507059e+37
  %v1834 = vand.u32 %v1807, 2147483648
  %v1835 = vor.u32 1.1754944e-38, %v1834
  %v1836 = vsel %vm1833, %v1835, %v1831
  %v1837 = vmul.f32 1.0, %v1836
  %v1838 = vmul.f32 %v1782, %v1636
  %v1839 = vmul.f32 %v1797, %v1637
  %v1840 = vmul.f32 %v1744, %v1798
  %v1841 = vmul.f32 %v1759, %v1799
  %v1842 = vadd.f32 %v1838, %v1840
  %v1843 = vadd.f32 %v1839, %v1841
  %v1844 = vtanh.pop %v1842
  %v1845 = vtanh.pop %v1843
  %v1846 = vmul.f32 %v1822, %v1844
  %v1847 = vmul.f32 %v1837, %v1845
  %v1848 = vadd.f32 %v1642, %v1846
  %v1849 = vadd.f32 %v1643, %v1847
  %v1850 = vmul.f32 %v1846, %v1848
  %v1851 = vmul.f32 %v1847, %v1849
  %1852 = vadd.xlane.f32.xlu0 %v1850
  %v1853 = vpop.xlane.xlu0 %1852
  %1854 = vadd.xlane.f32.xlu0 %v1851
  %v1855 = vpop.xlane.xlu0 %1854
  %v1856 = vmul.f32 %v1853, %v1846
  %v1857 = vmul.f32 %v1855, %v1847
  %1858 = vst [vmem:[%s2] sm:$0xff] %v1856
  %1859 = vst [vmem:[%s2 + $0x8] sm:$0xff] %v1857
  // Predicated region
  $region10: #{forward.1} parent=0 // pred_check
    _
  $region11: #{forward.1} parent=0 // pred_check_branch
    %1861 = sbr.rel (0) target = $region13
  $region12: #{forward.1} parent=0 // pred_region
    _
  $region13: #{forward.1} parent=0 // pred_fallthru
    _
  // Predicated region
  $region14: #{forward.1} parent=0 // pred_check
    _
  $region15: #{forward.1} parent=0 // pred_check_branch
    %1863 = sbr.rel (0) target = $region17
  $region16: #{forward.1} parent=0 // pred_region
    _
  $region17: #{forward.1} parent=0 // pred_fallthru
    _

</llo_original>
